<compile_context>
chip_gen: v6e
topology: v6e:2x2x1
jax: 0.10.0
libtpu: 0.0.40
codegen_flags: <defaults>
</compile_context>

<pallas_src>
import functools

import jax
import jax.numpy as jnp
import numpy as np
from jax import lax
from jax.experimental import pallas as pl
from jax.experimental.pallas import tpu as pltpu

EPS = 1e-5  # bnArgs['eps'] (PyTorch BatchNorm2d default)


def _round_up(a, m):
    return ((a + m - 1) // m) * m


# ----------------------------------------------------------------------------
# Fused Pallas kernel: BN1+ReLU -> conv3x3 -> BN2+ReLU -> conv3x3  (one batch el.)
# ----------------------------------------------------------------------------
def lvb_kernel(x_ref, w1_ref, w2_ref, s1_ref, b1_ref, s2_ref, b2_ref, mask_ref,
               o_ref, h0_ref, stk1_ref, h1_ref, stk2_ref, *, wp):
    """Lane-padded flat layout (all last dims are multiples of 128):

      x_ref   : (1, Cin_p, L0p) bf16  padded/flattened input with zero margins
      w1_ref  : (F, 9*Cin_p)    bf16  conv1 weights, columns ordered (tap, cin)
      w2_ref  : (F, 9*F)        bf16  conv2 weights
      s*/b*   : (C, 1)          f32   folded eval-mode BatchNorm scale / shift
      mask_ref: (1, L0p)        f32   1.0 on interior image pixels, 0.0 elsewhere
      o_ref   : (1, F, Sp)      f32   conv2 output, padded-flat layout (lane-dense)
      h0_ref  : (Cin_p, L0p)    bf16  scratch: BN1+ReLU activations
      stk1_ref: (9*Cin_p, L1p)  bf16  scratch: im2col stack for conv1
      h1_ref  : (F, L1p)        bf16  scratch: BN2+ReLU activations
      stk2_ref: (9*F, Sp)       bf16  scratch: im2col stack for conv2
    """
    m1 = wp + 1
    offsets = [(dy - 1) * wp + (dx - 1) for dy in range(3) for dx in range(3)]
    cin_p = h0_ref.shape[0]
    f = o_ref.shape[1]
    l1p = stk1_ref.shape[1]          # conv1 output width (128-multiple)
    sp = stk2_ref.shape[1]           # conv2 output width (128-multiple)

    # ---- BN1 (folded) + ReLU in f32 (bf16 input upcast); mask re-zeroes padding ----
    x = x_ref[0].astype(jnp.float32)
    h0 = jnp.maximum(x * s1_ref[...] + b1_ref[...], 0.0) * mask_ref[...]
    h0_ref[...] = h0.astype(h0_ref.dtype)            # full-width, lane-dense store

    # ---- conv1: im2col (9 lane-shifted views) into VMEM, one MXU matmul ------------
    for k, off in enumerate(offsets):                 # statically unrolled
        stk1_ref[k * cin_p:(k + 1) * cin_p, :] = h0_ref[:, m1 + off:m1 + off + l1p]
    z1 = jnp.dot(w1_ref[...], stk1_ref[...], preferred_element_type=jnp.float32)

    # ---- BN2 (folded) + ReLU; mask so conv2 sees proper zero padding ---------------
    h1 = jnp.maximum(z1 * s2_ref[...] + b2_ref[...], 0.0) * mask_ref[:, m1:m1 + l1p]
    h1_ref[...] = h1.astype(h1_ref.dtype)             # full-width, lane-dense store

    # ---- conv2: same im2col + single matmul (K = 9*F) ------------------------------
    for k, off in enumerate(offsets):
        stk2_ref[k * f:(k + 1) * f, :] = h1_ref[:, m1 + off:m1 + off + sp]
    z2 = jnp.dot(w2_ref[...], stk2_ref[...], preferred_element_type=jnp.float32)
    o_ref[0] = z2.astype(o_ref.dtype)                  # (F, Sp) lane-dense store


# ----------------------------------------------------------------------------
# Wrapper: NCHW in / NCHW out
# ----------------------------------------------------------------------------
def learn_vector_block_forward(x, params, eps=EPS):
    """x: (N, Cin, H, W) f32 -> (N, featmaps, H, W) f32."""
    N, Cin, H, W = x.shape
    F = params["w1"].shape[0]
    assert F % 16 == 0, "featmaps must be a multiple of 16 (bf16 sublane tile)"
    Hp, Wp = H + 2, W + 2
    S = Hp * Wp
    M1 = Wp + 1                                  # max |tap offset| in flat layout
    Cin_p = _round_up(Cin, 16)

    # Lane-pad every flat domain to a multiple of 128 (unmasked vst everywhere),
    # keeping enough margin that every static tap slice stays in bounds.
    Sp = _round_up(S, 128)                       # conv2 output width
    L1p = _round_up(max(S + 2 * M1, 2 * M1 + Sp), 128)   # conv1 output width
    L0p = _round_up(max(S + 4 * M1, 2 * M1 + L1p), 128)  # conv1 input width

    # Fold eval-mode BatchNorm into per-channel scale/shift.
    s1 = params["gamma1"] / jnp.sqrt(params["var1"] + eps)
    b1 = params["beta1"] - params["mean1"] * s1
    s2 = params["gamma2"] / jnp.sqrt(params["var2"] + eps)
    b2 = params["beta2"] - params["mean2"] * s2
    s1 = jnp.pad(s1, (0, Cin_p - Cin), constant_values=1.0).reshape(Cin_p, 1)
    b1 = jnp.pad(b1, (0, Cin_p - Cin)).reshape(Cin_p, 1)
    s2 = s2.reshape(F, 1)
    b2 = b2.reshape(F, 1)

    # Conv weights: OIHW -> (O, tap, I) -> lane-dense (O, 9*I) in bf16 for the MXU.
    w1 = jnp.transpose(params["w1"], (0, 2, 3, 1))                     # (F,3,3,Cin)
    w1 = jnp.pad(w1, ((0, 0), (0, 0), (0, 0), (0, Cin_p - Cin)))
    w1 = w1.reshape(F, 9 * Cin_p).astype(jnp.bfloat16)
    w2 = jnp.transpose(params["w2"], (0, 2, 3, 1)).reshape(F, 9 * F).astype(jnp.bfloat16)

    # Input: pad channels, zero-pad spatial by 1, flatten HW, add flat zero margins,
    # ship as bf16 (halves the activation HBM->VMEM DMA; upcast inside the kernel).
    xp = jnp.pad(x, ((0, 0), (0, Cin_p - Cin), (1, 1), (1, 1))).reshape(N, Cin_p, S)
    x0 = jnp.pad(xp, ((0, 0), (0, 0), (2 * M1, L0p - S - 2 * M1)))     # (N,Cin_p,L0p)
    x0 = x0.astype(jnp.bfloat16)

    # Interior-pixel mask over the extended flat domain (static numpy constant).
    m = np.zeros((Hp, Wp), np.float32)
    m[1:H + 1, 1:W + 1] = 1.0
    mask_np = np.zeros((1, L0p), np.float32)
    mask_np[0, 2 * M1:2 * M1 + S] = m.reshape(-1)
    mask0 = jnp.asarray(mask_np)

    out = pl.pallas_call(
        functools.partial(lvb_kernel, wp=Wp),
        out_shape=jax.ShapeDtypeStruct((N, F, Sp), jnp.float32),
        grid=(N,),
        in_specs=[
            pl.BlockSpec((1, Cin_p, L0p), lambda n: (n, 0, 0)),
            pl.BlockSpec((F, 9 * Cin_p), lambda n: (0, 0)),
            pl.BlockSpec((F, 9 * F), lambda n: (0, 0)),
            pl.BlockSpec((Cin_p, 1), lambda n: (0, 0)),
            pl.BlockSpec((Cin_p, 1), lambda n: (0, 0)),
            pl.BlockSpec((F, 1), lambda n: (0, 0)),
            pl.BlockSpec((F, 1), lambda n: (0, 0)),
            pl.BlockSpec((1, L0p), lambda n: (0, 0)),
        ],
        out_specs=pl.BlockSpec((1, F, Sp), lambda n: (n, 0, 0)),
        scratch_shapes=[
            pltpu.VMEM((Cin_p, L0p), jnp.bfloat16),
            pltpu.VMEM((9 * Cin_p, L1p), jnp.bfloat16),
            pltpu.VMEM((F, L1p), jnp.bfloat16),
            pltpu.VMEM((9 * F, Sp), jnp.bfloat16),
        ],
        compiler_params=pltpu.CompilerParams(
            dimension_semantics=("parallel",),          # feeds both v7x TensorCores (N=2)
            vmem_limit_bytes=32 * 1024 * 1024,          # explicit (v5e default is 16 MiB)
        ),
    )(x0, w1, w2, s1, b1, s2, b2, mask0)

    # Crop padded-flat layout back to NCHW interior.
    # TODO(synk): at production sizes write interior rows directly via the output
    #             index_map when strip-mining, so this extra HBM pass disappears.
    return out[:, :, :S].reshape(N, F, Hp, Wp)[:, :, 1:H + 1, 1:W + 1]


# ----------------------------------------------------------------------------
# Pure-JAX f32 reference (for correctness check)
# ----------------------------------------------------------------------------
def _bn_relu_ref(x, gamma, beta, mean, var, eps=EPS):
    s = gamma / jnp.sqrt(var + eps)
    b = beta - mean * s
    return jnp.maximum(x * s[None, :, None, None] + b[None, :, None, None], 0.0)


def _conv_ref(x, w_oihw):
    return lax.conv_general_dilated(
        x, w_oihw, window_strides=(1, 1), padding=((1, 1), (1, 1)),
        dimension_numbers=("NCHW", "OIHW", "NCHW"))


def learn_vector_block_reference(x, p, eps=EPS):
    e = _bn_relu_ref(x, p["gamma1"], p["beta1"], p["mean1"], p["var1"], eps)
    e = _conv_ref(e, p["w1"])
    e = _bn_relu_ref(e, p["gamma2"], p["beta2"], p["mean2"], p["var2"], eps)
    e = _conv_ref(e, p["w2"])
    return e


# ----------------------------------------------------------------------------
if __name__ == "__main__":
    # input_shape = [None, 4, 16, 16], featmaps = 32, filter_size = (3, 3)
    N, Cin, H, W = 2, 4, 16, 16
    F = 32

    key = jax.random.PRNGKey(0)
    ks = jax.random.split(key, 12)
    x = jax.random.normal(ks[0], (N, Cin, H, W), jnp.float32)

    params = {
        "w1": 0.1 * jax.random.normal(ks[1], (F, Cin, 3, 3), jnp.float32),
        "w2": 0.1 * jax.random.normal(ks[2], (F, F, 3, 3), jnp.float32),
        "gamma1": 1.0 + 0.1 * jax.random.normal(ks[3], (Cin,), jnp.float32),
        "beta1": 0.1 * jax.random.normal(ks[4], (Cin,), jnp.float32),
        "mean1": 0.1 * jax.random.normal(ks[5], (Cin,), jnp.float32),
        "var1": jax.random.uniform(ks[6], (Cin,), jnp.float32, 0.5, 1.5),
        "gamma2": 1.0 + 0.1 * jax.random.normal(ks[7], (F,), jnp.float32),
        "beta2": 0.1 * jax.random.normal(ks[8], (F,), jnp.float32),
        "mean2": 0.1 * jax.random.normal(ks[9], (F,), jnp.float32),
        "var2": jax.random.uniform(ks[10], (F,), jnp.float32, 0.5, 1.5),
    }

    fwd = jax.jit(learn_vector_block_forward)
    out = jax.block_until_ready(fwd(x, params))

    ref = jax.block_until_ready(learn_vector_block_reference(x, params))
    assert out.shape == (N, F, H, W), out.shape
    # bf16 input stream + bf16 MXU operands (f32 accumulation) vs f32 reference:
    # tolerance covers ~1% bf16 rounding through the two convs.
    assert np.allclose(np.asarray(out), np.asarray(ref), atol=4e-2, rtol=4e-2), (
        "max abs err = %g" % float(np.max(np.abs(np.asarray(out) - np.asarray(ref)))))

    print("KERNEL_OK")
</pallas_src>

<mosaic_0001>
module attributes {stable_mosaic.version = 11 : i64} {
  func.func @lvb_kernel(%arg0: i32, %arg1: memref<1x16x640xbf16, #tpu.memory_space<vmem>>, %arg2: memref<32x144xbf16, #tpu.memory_space<vmem>>, %arg3: memref<32x288xbf16, #tpu.memory_space<vmem>>, %arg4: memref<16x1xf32, #tpu.memory_space<vmem>>, %arg5: memref<16x1xf32, #tpu.memory_space<vmem>>, %arg6: memref<32x1xf32, #tpu.memory_space<vmem>>, %arg7: memref<32x1xf32, #tpu.memory_space<vmem>>, %arg8: memref<1x640xf32, #tpu.memory_space<vmem>>, %arg9: memref<1x32x384xf32, #tpu.memory_space<vmem>>, %arg10: memref<16x640xbf16, #tpu.memory_space<vmem>>, %arg11: memref<144x512xbf16, #tpu.memory_space<vmem>>, %arg12: memref<32x512xbf16, #tpu.memory_space<vmem>>, %arg13: memref<288x384xbf16, #tpu.memory_space<vmem>>) attributes {dimension_semantics = [#tpu.dimension_semantics<parallel>], iteration_bounds = array<i64: 2>, scalar_prefetch = 0 : i64, scratch_operands = 4 : i64, tpu.core_type = #tpu.core_type<tc>, window_params = [{transform_indices = @transform_0, window_bounds = array<i64: 1, 16, 640>}, {pipeline_mode = #tpu.pipeline_mode<synchronous>, transform_indices = @transform_1, window_bounds = array<i64: 32, 144>}, {pipeline_mode = #tpu.pipeline_mode<synchronous>, transform_indices = @transform_2, window_bounds = array<i64: 32, 288>}, {pipeline_mode = #tpu.pipeline_mode<synchronous>, transform_indices = @transform_3, window_bounds = array<i64: 16, 1>}, {pipeline_mode = #tpu.pipeline_mode<synchronous>, transform_indices = @transform_4, window_bounds = array<i64: 16, 1>}, {pipeline_mode = #tpu.pipeline_mode<synchronous>, transform_indices = @transform_5, window_bounds = array<i64: 32, 1>}, {pipeline_mode = #tpu.pipeline_mode<synchronous>, transform_indices = @transform_6, window_bounds = array<i64: 32, 1>}, {pipeline_mode = #tpu.pipeline_mode<synchronous>, transform_indices = @transform_7, window_bounds = array<i64: 1, 640>}, {transform_indices = @transform_8, window_bounds = array<i64: 1, 32, 384>}]} {
    %c0 = arith.constant 0 : index
    %c0_0 = arith.constant 0 : index
    %c0_1 = arith.constant 0 : index
    %0 = vector.load %arg1[%c0, %c0_0, %c0_1] : memref<1x16x640xbf16, #tpu.memory_space<vmem>>, vector<1x16x640xbf16>
    %1 = vector.shape_cast %0 : vector<1x16x640xbf16> to vector<16x640xbf16>
    %2 = arith.extf %1 : vector<16x640xbf16> to vector<16x640xf32>
    %c0_2 = arith.constant 0 : index
    %c0_3 = arith.constant 0 : index
    %3 = vector.load %arg4[%c0_2, %c0_3] : memref<16x1xf32, #tpu.memory_space<vmem>>, vector<16x1xf32>
    %4 = vector.broadcast %3 : vector<16x1xf32> to vector<16x640xf32>
    %5 = arith.mulf %2, %4 : vector<16x640xf32>
    %c0_4 = arith.constant 0 : index
    %c0_5 = arith.constant 0 : index
    %6 = vector.load %arg5[%c0_4, %c0_5] : memref<16x1xf32, #tpu.memory_space<vmem>>, vector<16x1xf32>
    %7 = vector.broadcast %6 : vector<16x1xf32> to vector<16x640xf32>
    %8 = arith.addf %5, %7 : vector<16x640xf32>
    %cst = arith.constant 0.000000e+00 : f32
    %9 = vector.broadcast %cst : f32 to vector<16x640xf32>
    %10 = arith.maximumf %8, %9 : vector<16x640xf32>
    %c0_6 = arith.constant 0 : index
    %c0_7 = arith.constant 0 : index
    %11 = vector.load %arg8[%c0_6, %c0_7] : memref<1x640xf32, #tpu.memory_space<vmem>>, vector<1x640xf32>
    %12 = vector.broadcast %11 : vector<1x640xf32> to vector<16x640xf32>
    %13 = arith.mulf %10, %12 : vector<16x640xf32>
    %14 = arith.truncf %13 : vector<16x640xf32> to vector<16x640xbf16>
    %c0_8 = arith.constant 0 : index
    %c0_9 = arith.constant 0 : index
    %15 = vector.load %arg10[%c0_8, %c0_9] : memref<16x640xbf16, #tpu.memory_space<vmem>>, vector<16x640xbf16>
    tpu.vector_store %arg10[%c0_8, %c0_9], %14 {strides = array<i32>} : memref<16x640xbf16, #tpu.memory_space<vmem>>, vector<16x640xbf16>,
    %c0_10 = arith.constant 0 : index
    %c0_11 = arith.constant 0 : index
    %16 = vector.load %arg10[%c0_10, %c0_11] : memref<16x640xbf16, #tpu.memory_space<vmem>>, vector<16x512xbf16>
    %c0_12 = arith.constant 0 : index
    %c0_13 = arith.constant 0 : index
    %17 = vector.load %arg11[%c0_12, %c0_13] : memref<144x512xbf16, #tpu.memory_space<vmem>>, vector<16x512xbf16>
    tpu.vector_store %arg11[%c0_12, %c0_13], %16 {strides = array<i32>} : memref<144x512xbf16, #tpu.memory_space<vmem>>, vector<16x512xbf16>,
    %c0_14 = arith.constant 0 : index
    %c1 = arith.constant 1 : index
    %18 = vector.load %arg10[%c0_14, %c1] : memref<16x640xbf16, #tpu.memory_space<vmem>>, vector<16x512xbf16>
    %c16 = arith.constant 16 : index
    %c0_15 = arith.constant 0 : index
    %19 = vector.load %arg11[%c16, %c0_15] : memref<144x512xbf16, #tpu.memory_space<vmem>>, vector<16x512xbf16>
    tpu.vector_store %arg11[%c16, %c0_15], %18 {strides = array<i32>} : memref<144x512xbf16, #tpu.memory_space<vmem>>, vector<16x512xbf16>,
    %c0_16 = arith.constant 0 : index
    %c2 = arith.constant 2 : index
    %20 = vector.load %arg10[%c0_16, %c2] : memref<16x640xbf16, #tpu.memory_space<vmem>>, vector<16x512xbf16>
    %c32 = arith.constant 32 : index
    %c0_17 = arith.constant 0 : index
    %21 = vector.load %arg11[%c32, %c0_17] : memref<144x512xbf16, #tpu.memory_space<vmem>>, vector<16x512xbf16>
    tpu.vector_store %arg11[%c32, %c0_17], %20 {strides = array<i32>} : memref<144x512xbf16, #tpu.memory_space<vmem>>, vector<16x512xbf16>,
    %c0_18 = arith.constant 0 : index
    %c18 = arith.constant 18 : index
    %22 = vector.load %arg10[%c0_18, %c18] : memref<16x640xbf16, #tpu.memory_space<vmem>>, vector<16x512xbf16>
    %c48 = arith.constant 48 : index
    %c0_19 = arith.constant 0 : index
    %23 = vector.load %arg11[%c48, %c0_19] : memref<144x512xbf16, #tpu.memory_space<vmem>>, vector<16x512xbf16>
    tpu.vector_store %arg11[%c48, %c0_19], %22 {strides = array<i32>} : memref<144x512xbf16, #tpu.memory_space<vmem>>, vector<16x512xbf16>,
    %c0_20 = arith.constant 0 : index
    %c19 = arith.constant 19 : index
    %24 = vector.load %arg10[%c0_20, %c19] : memref<16x640xbf16, #tpu.memory_space<vmem>>, vector<16x512xbf16>
    %c64 = arith.constant 64 : index
    %c0_21 = arith.constant 0 : index
    %25 = vector.load %arg11[%c64, %c0_21] : memref<144x512xbf16, #tpu.memory_space<vmem>>, vector<16x512xbf16>
    tpu.vector_store %arg11[%c64, %c0_21], %24 {strides = array<i32>} : memref<144x512xbf16, #tpu.memory_space<vmem>>, vector<16x512xbf16>,
    %c0_22 = arith.constant 0 : index
    %c20 = arith.constant 20 : index
    %26 = vector.load %arg10[%c0_22, %c20] : memref<16x640xbf16, #tpu.memory_space<vmem>>, vector<16x512xbf16>
    %c80 = arith.constant 80 : index
    %c0_23 = arith.constant 0 : index
    %27 = vector.load %arg11[%c80, %c0_23] : memref<144x512xbf16, #tpu.memory_space<vmem>>, vector<16x512xbf16>
    tpu.vector_store %arg11[%c80, %c0_23], %26 {strides = array<i32>} : memref<144x512xbf16, #tpu.memory_space<vmem>>, vector<16x512xbf16>,
    %c0_24 = arith.constant 0 : index
    %c36 = arith.constant 36 : index
    %28 = vector.load %arg10[%c0_24, %c36] : memref<16x640xbf16, #tpu.memory_space<vmem>>, vector<16x512xbf16>
    %c96 = arith.constant 96 : index
    %c0_25 = arith.constant 0 : index
    %29 = vector.load %arg11[%c96, %c0_25] : memref<144x512xbf16, #tpu.memory_space<vmem>>, vector<16x512xbf16>
    tpu.vector_store %arg11[%c96, %c0_25], %28 {strides = array<i32>} : memref<144x512xbf16, #tpu.memory_space<vmem>>, vector<16x512xbf16>,
    %c0_26 = arith.constant 0 : index
    %c37 = arith.constant 37 : index
    %30 = vector.load %arg10[%c0_26, %c37] : memref<16x640xbf16, #tpu.memory_space<vmem>>, vector<16x512xbf16>
    %c112 = arith.constant 112 : index
    %c0_27 = arith.constant 0 : index
    %31 = vector.load %arg11[%c112, %c0_27] : memref<144x512xbf16, #tpu.memory_space<vmem>>, vector<16x512xbf16>
    tpu.vector_store %arg11[%c112, %c0_27], %30 {strides = array<i32>} : memref<144x512xbf16, #tpu.memory_space<vmem>>, vector<16x512xbf16>,
    %c0_28 = arith.constant 0 : index
    %c38 = arith.constant 38 : index
    %32 = vector.load %arg10[%c0_28, %c38] : memref<16x640xbf16, #tpu.memory_space<vmem>>, vector<16x512xbf16>
    %c128 = arith.constant 128 : index
    %c0_29 = arith.constant 0 : index
    %33 = vector.load %arg11[%c128, %c0_29] : memref<144x512xbf16, #tpu.memory_space<vmem>>, vector<16x512xbf16>
    tpu.vector_store %arg11[%c128, %c0_29], %32 {strides = array<i32>} : memref<144x512xbf16, #tpu.memory_space<vmem>>, vector<16x512xbf16>,
    %c0_30 = arith.constant 0 : index
    %c0_31 = arith.constant 0 : index
    %34 = vector.load %arg2[%c0_30, %c0_31] : memref<32x144xbf16, #tpu.memory_space<vmem>>, vector<32x144xbf16>
    %c0_32 = arith.constant 0 : index
    %c0_33 = arith.constant 0 : index
    %35 = vector.load %arg11[%c0_32, %c0_33] : memref<144x512xbf16, #tpu.memory_space<vmem>>, vector<144x512xbf16>
    %cst_34 = arith.constant dense<0.000000e+00> : vector<32x512xf32>
    %36 = tpu.matmul %34, %35, %cst_34 {dimension_numbers = #tpu.dot_dimension_numbers<[1], [0], [0], [1], [0, 0, 1, 1], [], []>} : vector<32x144xbf16>, vector<144x512xbf16>, vector<32x512xf32> -> vector<32x512xf32>
    %c0_35 = arith.constant 0 : index
    %c0_36 = arith.constant 0 : index
    %37 = vector.load %arg6[%c0_35, %c0_36] : memref<32x1xf32, #tpu.memory_space<vmem>>, vector<32x1xf32>
    %38 = vector.broadcast %37 : vector<32x1xf32> to vector<32x512xf32>
    %39 = arith.mulf %36, %38 : vector<32x512xf32>
    %c0_37 = arith.constant 0 : index
    %c0_38 = arith.constant 0 : index
    %40 = vector.load %arg7[%c0_37, %c0_38] : memref<32x1xf32, #tpu.memory_space<vmem>>, vector<32x1xf32>
    %41 = vector.broadcast %40 : vector<32x1xf32> to vector<32x512xf32>
    %42 = arith.addf %39, %41 : vector<32x512xf32>
    %cst_39 = arith.constant 0.000000e+00 : f32
    %43 = vector.broadcast %cst_39 : f32 to vector<32x512xf32>
    %44 = arith.maximumf %42, %43 : vector<32x512xf32>
    %c0_40 = arith.constant 0 : index
    %c19_41 = arith.constant 19 : index
    %45 = vector.load %arg8[%c0_40, %c19_41] : memref<1x640xf32, #tpu.memory_space<vmem>>, vector<1x512xf32>
    %46 = vector.broadcast %45 : vector<1x512xf32> to vector<32x512xf32>
    %47 = arith.mulf %44, %46 : vector<32x512xf32>
    %48 = arith.truncf %47 : vector<32x512xf32> to vector<32x512xbf16>
    %c0_42 = arith.constant 0 : index
    %c0_43 = arith.constant 0 : index
    %49 = vector.load %arg12[%c0_42, %c0_43] : memref<32x512xbf16, #tpu.memory_space<vmem>>, vector<32x512xbf16>
    tpu.vector_store %arg12[%c0_42, %c0_43], %48 {strides = array<i32>} : memref<32x512xbf16, #tpu.memory_space<vmem>>, vector<32x512xbf16>,
    %c0_44 = arith.constant 0 : index
    %c0_45 = arith.constant 0 : index
    %50 = vector.load %arg12[%c0_44, %c0_45] : memref<32x512xbf16, #tpu.memory_space<vmem>>, vector<32x384xbf16>
    %c0_46 = arith.constant 0 : index
    %c0_47 = arith.constant 0 : index
    %51 = vector.load %arg13[%c0_46, %c0_47] : memref<288x384xbf16, #tpu.memory_space<vmem>>, vector<32x384xbf16>
    tpu.vector_store %arg13[%c0_46, %c0_47], %50 {strides = array<i32>} : memref<288x384xbf16, #tpu.memory_space<vmem>>, vector<32x384xbf16>,
    %c0_48 = arith.constant 0 : index
    %c1_49 = arith.constant 1 : index
    %52 = vector.load %arg12[%c0_48, %c1_49] : memref<32x512xbf16, #tpu.memory_space<vmem>>, vector<32x384xbf16>
    %c32_50 = arith.constant 32 : index
    %c0_51 = arith.constant 0 : index
    %53 = vector.load %arg13[%c32_50, %c0_51] : memref<288x384xbf16, #tpu.memory_space<vmem>>, vector<32x384xbf16>
    tpu.vector_store %arg13[%c32_50, %c0_51], %52 {strides = array<i32>} : memref<288x384xbf16, #tpu.memory_space<vmem>>, vector<32x384xbf16>,
    %c0_52 = arith.constant 0 : index
    %c2_53 = arith.constant 2 : index
    %54 = vector.load %arg12[%c0_52, %c2_53] : memref<32x512xbf16, #tpu.memory_space<vmem>>, vector<32x384xbf16>
    %c64_54 = arith.constant 64 : index
    %c0_55 = arith.constant 0 : index
    %55 = vector.load %arg13[%c64_54, %c0_55] : memref<288x384xbf16, #tpu.memory_space<vmem>>, vector<32x384xbf16>
    tpu.vector_store %arg13[%c64_54, %c0_55], %54 {strides = array<i32>} : memref<288x384xbf16, #tpu.memory_space<vmem>>, vector<32x384xbf16>,
    %c0_56 = arith.constant 0 : index
    %c18_57 = arith.constant 18 : index
    %56 = vector.load %arg12[%c0_56, %c18_57] : memref<32x512xbf16, #tpu.memory_space<vmem>>, vector<32x384xbf16>
    %c96_58 = arith.constant 96 : index
    %c0_59 = arith.constant 0 : index
    %57 = vector.load %arg13[%c96_58, %c0_59] : memref<288x384xbf16, #tpu.memory_space<vmem>>, vector<32x384xbf16>
    tpu.vector_store %arg13[%c96_58, %c0_59], %56 {strides = array<i32>} : memref<288x384xbf16, #tpu.memory_space<vmem>>, vector<32x384xbf16>,
    %c0_60 = arith.constant 0 : index
    %c19_61 = arith.constant 19 : index
    %58 = vector.load %arg12[%c0_60, %c19_61] : memref<32x512xbf16, #tpu.memory_space<vmem>>, vector<32x384xbf16>
    %c128_62 = arith.constant 128 : index
    %c0_63 = arith.constant 0 : index
    %59 = vector.load %arg13[%c128_62, %c0_63] : memref<288x384xbf16, #tpu.memory_space<vmem>>, vector<32x384xbf16>
    tpu.vector_store %arg13[%c128_62, %c0_63], %58 {strides = array<i32>} : memref<288x384xbf16, #tpu.memory_space<vmem>>, vector<32x384xbf16>,
    %c0_64 = arith.constant 0 : index
    %c20_65 = arith.constant 20 : index
    %60 = vector.load %arg12[%c0_64, %c20_65] : memref<32x512xbf16, #tpu.memory_space<vmem>>, vector<32x384xbf16>
    %c160 = arith.constant 160 : index
    %c0_66 = arith.constant 0 : index
    %61 = vector.load %arg13[%c160, %c0_66] : memref<288x384xbf16, #tpu.memory_space<vmem>>, vector<32x384xbf16>
    tpu.vector_store %arg13[%c160, %c0_66], %60 {strides = array<i32>} : memref<288x384xbf16, #tpu.memory_space<vmem>>, vector<32x384xbf16>,
    %c0_67 = arith.constant 0 : index
    %c36_68 = arith.constant 36 : index
    %62 = vector.load %arg12[%c0_67, %c36_68] : memref<32x512xbf16, #tpu.memory_space<vmem>>, vector<32x384xbf16>
    %c192 = arith.constant 192 : index
    %c0_69 = arith.constant 0 : index
    %63 = vector.load %arg13[%c192, %c0_69] : memref<288x384xbf16, #tpu.memory_space<vmem>>, vector<32x384xbf16>
    tpu.vector_store %arg13[%c192, %c0_69], %62 {strides = array<i32>} : memref<288x384xbf16, #tpu.memory_space<vmem>>, vector<32x384xbf16>,
    %c0_70 = arith.constant 0 : index
    %c37_71 = arith.constant 37 : index
    %64 = vector.load %arg12[%c0_70, %c37_71] : memref<32x512xbf16, #tpu.memory_space<vmem>>, vector<32x384xbf16>
    %c224 = arith.constant 224 : index
    %c0_72 = arith.constant 0 : index
    %65 = vector.load %arg13[%c224, %c0_72] : memref<288x384xbf16, #tpu.memory_space<vmem>>, vector<32x384xbf16>
    tpu.vector_store %arg13[%c224, %c0_72], %64 {strides = array<i32>} : memref<288x384xbf16, #tpu.memory_space<vmem>>, vector<32x384xbf16>,
    %c0_73 = arith.constant 0 : index
    %c38_74 = arith.constant 38 : index
    %66 = vector.load %arg12[%c0_73, %c38_74] : memref<32x512xbf16, #tpu.memory_space<vmem>>, vector<32x384xbf16>
    %c256 = arith.constant 256 : index
    %c0_75 = arith.constant 0 : index
    %67 = vector.load %arg13[%c256, %c0_75] : memref<288x384xbf16, #tpu.memory_space<vmem>>, vector<32x384xbf16>
    tpu.vector_store %arg13[%c256, %c0_75], %66 {strides = array<i32>} : memref<288x384xbf16, #tpu.memory_space<vmem>>, vector<32x384xbf16>,
    %c0_76 = arith.constant 0 : index
    %c0_77 = arith.constant 0 : index
    %68 = vector.load %arg3[%c0_76, %c0_77] : memref<32x288xbf16, #tpu.memory_space<vmem>>, vector<32x288xbf16>
    %c0_78 = arith.constant 0 : index
    %c0_79 = arith.constant 0 : index
    %69 = vector.load %arg13[%c0_78, %c0_79] : memref<288x384xbf16, #tpu.memory_space<vmem>>, vector<288x384xbf16>
    %cst_80 = arith.constant dense<0.000000e+00> : vector<32x384xf32>
    %70 = tpu.matmul %68, %69, %cst_80 {dimension_numbers = #tpu.dot_dimension_numbers<[1], [0], [0], [1], [0, 0, 1, 1], [], []>} : vector<32x288xbf16>, vector<288x384xbf16>, vector<32x384xf32> -> vector<32x384xf32>
    %c0_81 = arith.constant 0 : index
    %c0_82 = arith.constant 0 : index
    %c0_83 = arith.constant 0 : index
    %71 = vector.load %arg9[%c0_81, %c0_82, %c0_83] : memref<1x32x384xf32, #tpu.memory_space<vmem>>, vector<1x32x384xf32>
    %72 = vector.shape_cast %71 : vector<1x32x384xf32> to vector<32x384xf32>
    %73 = vector.shape_cast %70 : vector<32x384xf32> to vector<1x32x384xf32>
    tpu.vector_store %arg9[%c0_81, %c0_82, %c0_83], %73 {strides = array<i32>} : memref<1x32x384xf32, #tpu.memory_space<vmem>>, vector<1x32x384xf32>,
    return
  }
  func.func @transform_0(%arg0: i32) -> (i32, i32, i32) {
    %c0_i32 = arith.constant 0 : i32
    %c0_i32_0 = arith.constant 0 : i32
    %c0_i32_1 = arith.constant 0 : i32
    return %arg0, %c0_i32, %c0_i32_0 : i32, i32, i32
  }
  func.func @transform_1(%arg0: i32) -> (i32, i32) {
    %c0_i32 = arith.constant 0 : i32
    %c0_i32_0 = arith.constant 0 : i32
    %c0_i32_1 = arith.constant 0 : i32
    return %c0_i32, %c0_i32_0 : i32, i32
  }
  func.func @transform_2(%arg0: i32) -> (i32, i32) {
    %c0_i32 = arith.constant 0 : i32
    %c0_i32_0 = arith.constant 0 : i32
    %c0_i32_1 = arith.constant 0 : i32
    return %c0_i32, %c0_i32_0 : i32, i32
  }
  func.func @transform_3(%arg0: i32) -> (i32, i32) {
    %c0_i32 = arith.constant 0 : i32
    %c0_i32_0 = arith.constant 0 : i32
    %c0_i32_1 = arith.constant 0 : i32
    return %c0_i32, %c0_i32_0 : i32, i32
  }
  func.func @transform_4(%arg0: i32) -> (i32, i32) {
    %c0_i32 = arith.constant 0 : i32
    %c0_i32_0 = arith.constant 0 : i32
    %c0_i32_1 = arith.constant 0 : i32
    return %c0_i32, %c0_i32_0 : i32, i32
  }
  func.func @transform_5(%arg0: i32) -> (i32, i32) {
    %c0_i32 = arith.constant 0 : i32
    %c0_i32_0 = arith.constant 0 : i32
    %c0_i32_1 = arith.constant 0 : i32
    return %c0_i32, %c0_i32_0 : i32, i32
  }
  func.func @transform_6(%arg0: i32) -> (i32, i32) {
    %c0_i32 = arith.constant 0 : i32
    %c0_i32_0 = arith.constant 0 : i32
    %c0_i32_1 = arith.constant 0 : i32
    return %c0_i32, %c0_i32_0 : i32, i32
  }
  func.func @transform_7(%arg0: i32) -> (i32, i32) {
    %c0_i32 = arith.constant 0 : i32
    %c0_i32_0 = arith.constant 0 : i32
    %c0_i32_1 = arith.constant 0 : i32
    return %c0_i32, %c0_i32_0 : i32, i32
  }
  func.func @transform_8(%arg0: i32) -> (i32, i32, i32) {
    %c0_i32 = arith.constant 0 : i32
    %c0_i32_0 = arith.constant 0 : i32
    %c0_i32_1 = arith.constant 0 : i32
    return %arg0, %c0_i32, %c0_i32_0 : i32, i32, i32
  }
}

</mosaic_0001>

<llo_original>
// kernel: learn_vector_block_forward.1
$region0: #{learn_vector_block_forward.1}
  #allocation0 [shape = 'u32[]', space=smem, size = 0x4, offset = 0x4, fixed_abs, tag = 'smem constant byte address 0x4 - core index']
  #allocation1 [shape = 'u32[144,128]{1,0:T(1,128)}', space=vmem, size = 0x12000, scoped, tag = 'internal scratch']
  #allocation2 [shape = 'bf16[16,640]{1,0:T(8,128)(2,1)}', space=vmem, size = 0x5000, scoped, tag = 'scratch operand']
  #allocation3 [shape = 'bf16[144,512]{1,0:T(8,128)(2,1)}', space=vmem, size = 0x24000, scoped, tag = 'scratch operand']
  #allocation4 [shape = 'bf16[32,512]{1,0:T(8,128)(2,1)}', space=vmem, size = 0x8000, scoped, tag = 'scratch operand']
  #allocation5 [shape = 'bf16[288,384]{1,0:T(8,128)(2,1)}', space=vmem, size = 0x36000, scoped, tag = 'scratch operand']
  %s0 = inlined_call_operand.vmem [shape: bf16[2,16,640], index: 0, kind: input, shape index: {}]
  %s1 = inlined_call_operand.vmem [shape: bf16[32,144], index: 1, kind: input, shape index: {}]
  %s2 = inlined_call_operand.vmem [shape: bf16[32,288], index: 2, kind: input, shape index: {}]
  %s3 = inlined_call_operand.vmem [shape: f32[16,1], index: 3, kind: input, shape index: {}]
  %s4 = inlined_call_operand.vmem [shape: f32[16,1], index: 4, kind: input, shape index: {}]
  %s5 = inlined_call_operand.vmem [shape: f32[32,1], index: 5, kind: input, shape index: {}]
  %s6 = inlined_call_operand.vmem [shape: f32[32,1], index: 6, kind: input, shape index: {}]
  %s7 = inlined_call_operand.vmem [shape: f32[1,640], index: 7, kind: input, shape index: {}]
  %s8 = inlined_call_operand.vmem [shape: f32[2,32,384], index: 8, kind: output, shape index: {}]
  %s9 = sld [smem:[#allocation0]]
  $region65: #{learn_vector_block_forward.1} parent=0
    _
  %s11 = ssub.s32 1, %s9
  %s12 = scalar_select 0, %s11, %s9
  loop: start=0, step=1, limit=4
  $region2: #{learn_vector_block_forward.1} parent=0 // loop_pre_header
    _
  $region3: #{learn_vector_block_forward.1} parent=0 // loop_header
    %s14 = sphi 0, %s18
    %p15 = scmp.ge.s32.totalorder %s14, 4
    %s24 = sphi 0, %s26
    %s27 = sphi 0, %s24
    %s28 = sphi 0, %s27
    %s44 = sphi 0, %s28
    %s48 = sphi 0, %s48
    %s50 = sphi 0, %s48
    %s51 = sphi 0, %s50
    %s65 = sphi 0, %s51
    %s69 = sphi 0, %s69
    %s71 = sphi 0, %s69
    %s72 = sphi 0, %s71
    %s86 = sphi 0, %s72
    %s90 = sphi 0, %s90
    %s92 = sphi 0, %s90
    %s93 = sphi 0, %s92
    %s107 = sphi 0, %s93
    %s111 = sphi 0, %s111
    %s113 = sphi 0, %s111
    %s114 = sphi 0, %s113
    %s128 = sphi 0, %s114
    %s132 = sphi 0, %s132
    %s134 = sphi 0, %s132
    %s135 = sphi 0, %s134
    %s149 = sphi 0, %s135
    %s153 = sphi 0, %s153
    %s155 = sphi 0, %s153
    %s156 = sphi 0, %s155
    %s170 = sphi 0, %s156
    %s174 = sphi 0, %s174
    %s176 = sphi 0, %s174
    %s177 = sphi 0, %s176
    %s191 = sphi 0, %s177
    %s197 = sphi 0, %s199
    %s200 = sphi 0, %s197
    %s201 = sphi 0, %s200
    %s217 = sphi 0, %s201
  $region4: #{learn_vector_block_forward.1} parent=0 // loop_header_branch
    %17 = sbr.rel (%p15) target = $region8
  $region5: #{learn_vector_block_forward.1} parent=0 // loop_body
    %s19 = ssub.s32 %s14, 1
    %s20 = ssub.s32 %s14, 2
    %s21 = sadd.s32 %s14, 1
    %s22 = ssub.s32 %s14, %s21
    %p23 = scmp.eq.s32.totalorder %s22, 0
    %s25 = sadd.s32 %s24, 1
    %s26 = scalar_select %p23, %s24, %s25
    %p29 = pneg %p23
    %p30 = scmp.eq.s32.totalorder %s14, 1
    %p31 = por %p29, %p30
    %p32 = scmp.ne.s32.totalorder %s24, %s27
    %p33 = scmp.eq.s32.totalorder %s14, 0
    %p34 = por %p32, %p33
    %p35 = scmp.ne.s32.totalorder %s24, %s27
    %p36 = scmp.eq.s32.totalorder %s19, 1
    %p37 = por %p35, %p36
    %p38 = scmp.ne.s32.totalorder %s27, %s28
    %p39 = scmp.eq.s32.totalorder %s19, 0
    %p40 = por %p38, %p39
    %p41 = scmp.ne.s32.totalorder %s27, %s28
    %p42 = scmp.eq.s32.totalorder %s20, 1
    %p43 = por %p41, %p42
    %p45 = scmp.ne.s32.totalorder %s28, %s44
    %p46 = scmp.eq.s32.totalorder %s20, 0
    %p47 = por %p45, %p46
    %s49 = sadd.s32 %s48, 1
    %p52 = scmp.eq.s32.totalorder %s14, 1
    %p53 = scmp.ne.s32.totalorder %s48, %s50
    %p54 = scmp.eq.s32.totalorder %s14, 0
    %p55 = por %p53, %p54
    %p56 = scmp.ne.s32.totalorder %s48, %s50
    %p57 = scmp.eq.s32.totalorder %s19, 1
    %p58 = por %p56, %p57
    %p59 = scmp.ne.s32.totalorder %s50, %s51
    %p60 = scmp.eq.s32.totalorder %s19, 0
    %p61 = por %p59, %p60
    %p62 = scmp.ne.s32.totalorder %s50, %s51
    %p63 = scmp.eq.s32.totalorder %s20, 1
    %p64 = por %p62, %p63
    %p66 = scmp.ne.s32.totalorder %s51, %s65
    %p67 = scmp.eq.s32.totalorder %s20, 0
    %p68 = por %p66, %p67
    %s70 = sadd.s32 %s69, 1
    %p73 = scmp.eq.s32.totalorder %s14, 1
    %p74 = scmp.ne.s32.totalorder %s69, %s71
    %p75 = scmp.eq.s32.totalorder %s14, 0
    %p76 = por %p74, %p75
    %p77 = scmp.ne.s32.totalorder %s69, %s71
    %p78 = scmp.eq.s32.totalorder %s19, 1
    %p79 = por %p77, %p78
    %p80 = scmp.ne.s32.totalorder %s71, %s72
    %p81 = scmp.eq.s32.totalorder %s19, 0
    %p82 = por %p80, %p81
    %p83 = scmp.ne.s32.totalorder %s71, %s72
    %p84 = scmp.eq.s32.totalorder %s20, 1
    %p85 = por %p83, %p84
    %p87 = scmp.ne.s32.totalorder %s72, %s86
    %p88 = scmp.eq.s32.totalorder %s20, 0
    %p89 = por %p87, %p88
    %s91 = sadd.s32 %s90, 1
    %p94 = scmp.eq.s32.totalorder %s14, 1
    %p95 = scmp.ne.s32.totalorder %s90, %s92
    %p96 = scmp.eq.s32.totalorder %s14, 0
    %p97 = por %p95, %p96
    %p98 = scmp.ne.s32.totalorder %s90, %s92
    %p99 = scmp.eq.s32.totalorder %s19, 1
    %p100 = por %p98, %p99
    %p101 = scmp.ne.s32.totalorder %s92, %s93
    %p102 = scmp.eq.s32.totalorder %s19, 0
    %p103 = por %p101, %p102
    %p104 = scmp.ne.s32.totalorder %s92, %s93
    %p105 = scmp.eq.s32.totalorder %s20, 1
    %p106 = por %p104, %p105
    %p108 = scmp.ne.s32.totalorder %s93, %s107
    %p109 = scmp.eq.s32.totalorder %s20, 0
    %p110 = por %p108, %p109
    %s112 = sadd.s32 %s111, 1
    %p115 = scmp.eq.s32.totalorder %s14, 1
    %p116 = scmp.ne.s32.totalorder %s111, %s113
    %p117 = scmp.eq.s32.totalorder %s14, 0
    %p118 = por %p116, %p117
    %p119 = scmp.ne.s32.totalorder %s111, %s113
    %p120 = scmp.eq.s32.totalorder %s19, 1
    %p121 = por %p119, %p120
    %p122 = scmp.ne.s32.totalorder %s113, %s114
    %p123 = scmp.eq.s32.totalorder %s19, 0
    %p124 = por %p122, %p123
    %p125 = scmp.ne.s32.totalorder %s113, %s114
    %p126 = scmp.eq.s32.totalorder %s20, 1
    %p127 = por %p125, %p126
    %p129 = scmp.ne.s32.totalorder %s114, %s128
    %p130 = scmp.eq.s32.totalorder %s20, 0
    %p131 = por %p129, %p130
    %s133 = sadd.s32 %s132, 1
    %p136 = scmp.eq.s32.totalorder %s14, 1
    %p137 = scmp.ne.s32.totalorder %s132, %s134
    %p138 = scmp.eq.s32.totalorder %s14, 0
    %p139 = por %p137, %p138
    %p140 = scmp.ne.s32.totalorder %s132, %s134
    %p141 = scmp.eq.s32.totalorder %s19, 1
    %p142 = por %p140, %p141
    %p143 = scmp.ne.s32.totalorder %s134, %s135
    %p144 = scmp.eq.s32.totalorder %s19, 0
    %p145 = por %p143, %p144
    %p146 = scmp.ne.s32.totalorder %s134, %s135
    %p147 = scmp.eq.s32.totalorder %s20, 1
    %p148 = por %p146, %p147
    %p150 = scmp.ne.s32.totalorder %s135, %s149
    %p151 = scmp.eq.s32.totalorder %s20, 0
    %p152 = por %p150, %p151
    %s154 = sadd.s32 %s153, 1
    %p157 = scmp.eq.s32.totalorder %s14, 1
    %p158 = scmp.ne.s32.totalorder %s153, %s155
    %p159 = scmp.eq.s32.totalorder %s14, 0
    %p160 = por %p158, %p159
    %p161 = scmp.ne.s32.totalorder %s153, %s155
    %p162 = scmp.eq.s32.totalorder %s19, 1
    %p163 = por %p161, %p162
    %p164 = scmp.ne.s32.totalorder %s155, %s156
    %p165 = scmp.eq.s32.totalorder %s19, 0
    %p166 = por %p164, %p165
    %p167 = scmp.ne.s32.totalorder %s155, %s156
    %p168 = scmp.eq.s32.totalorder %s20, 1
    %p169 = por %p167, %p168
    %p171 = scmp.ne.s32.totalorder %s156, %s170
    %p172 = scmp.eq.s32.totalorder %s20, 0
    %p173 = por %p171, %p172
    %s175 = sadd.s32 %s174, 1
    %p178 = scmp.eq.s32.totalorder %s14, 1
    %p179 = scmp.ne.s32.totalorder %s174, %s176
    %p180 = scmp.eq.s32.totalorder %s14, 0
    %p181 = por %p179, %p180
    %p182 = scmp.ne.s32.totalorder %s174, %s176
    %p183 = scmp.eq.s32.totalorder %s19, 1
    %p184 = por %p182, %p183
    %p185 = scmp.ne.s32.totalorder %s176, %s177
    %p186 = scmp.eq.s32.totalorder %s19, 0
    %p187 = por %p185, %p186
    %p188 = scmp.ne.s32.totalorder %s176, %s177
    %p189 = scmp.eq.s32.totalorder %s20, 1
    %p190 = por %p188, %p189
    %p192 = scmp.ne.s32.totalorder %s177, %s191
    %p193 = scmp.eq.s32.totalorder %s20, 0
    %p194 = por %p192, %p193
    %s195 = ssub.s32 %s14, %s21
    %p196 = scmp.eq.s32.totalorder %s195, 0
    %s198 = sadd.s32 %s197, 1
    %s199 = scalar_select %p196, %s197, %s198
    %p202 = pneg %p196
    %p203 = scmp.eq.s32.totalorder %s14, 1
    %p204 = por %p202, %p203
    %p205 = scmp.ne.s32.totalorder %s197, %s200
    %p206 = scmp.eq.s32.totalorder %s14, 0
    %p207 = por %p205, %p206
    %p208 = scmp.ne.s32.totalorder %s197, %s200
    %p209 = scmp.eq.s32.totalorder %s19, 1
    %p210 = por %p208, %p209
    %p211 = scmp.ne.s32.totalorder %s200, %s201
    %p212 = scmp.eq.s32.totalorder %s19, 0
    %p213 = por %p211, %p212
    %p214 = scmp.ne.s32.totalorder %s200, %s201
    %p215 = scmp.eq.s32.totalorder %s20, 1
    %p216 = por %p214, %p215
    %p218 = scmp.ne.s32.totalorder %s201, %s217
    %p219 = scmp.eq.s32.totalorder %s20, 0
    %p220 = por %p218, %p219
    %p221 = scmp.le.s32.totalorder 1, %s14
    %p222 = scmp.lt.s32.totalorder %s14, 3
    %p223 = pnand %p221, %p222
    %p224 = pneg %p223
    // Predicated region
    $region9: #{learn_vector_block_forward.1} parent=5 // pred_check
      _
    $region10: #{learn_vector_block_forward.1} parent=5 // pred_check_branch
      %226 = sbr.rel (%p223) target = $region12
    $region11: #{learn_vector_block_forward.1} parent=5 // pred_region
      %s227 = ssub.s32 %s14, 1
      // Predicated region
      $region13: #{learn_vector_block_forward.1} parent=11 // pred_check
        %p228 = pneg %p61
      $region14: #{learn_vector_block_forward.1} parent=11 // pred_check_branch
        %230 = sbr.rel (%p228) target = $region16
      $region15: #{learn_vector_block_forward.1} parent=11 // pred_region
        _
      $region16: #{learn_vector_block_forward.1} parent=11 // pred_fallthru
        _
      // Predicated region
      $region17: #{learn_vector_block_forward.1} parent=11 // pred_check
        %p231 = pneg %p82
      $region18: #{learn_vector_block_forward.1} parent=11 // pred_check_branch
        %233 = sbr.rel (%p231) target = $region20
      $region19: #{learn_vector_block_forward.1} parent=11 // pred_region
        _
      $region20: #{learn_vector_block_forward.1} parent=11 // pred_fallthru
        _
      // Predicated region
      $region21: #{learn_vector_block_forward.1} parent=11 // pred_check
        %p234 = pneg %p103
      $region22: #{learn_vector_block_forward.1} parent=11 // pred_check_branch
        %236 = sbr.rel (%p234) target = $region24
      $region23: #{learn_vector_block_forward.1} parent=11 // pred_region
        _
      $region24: #{learn_vector_block_forward.1} parent=11 // pred_fallthru
        _
      // Predicated region
      $region25: #{learn_vector_block_forward.1} parent=11 // pred_check
        %p237 = pneg %p124
      $region26: #{learn_vector_block_forward.1} parent=11 // pred_check_branch
        %239 = sbr.rel (%p237) target = $region28
      $region27: #{learn_vector_block_forward.1} parent=11 // pred_region
        _
      $region28: #{learn_vector_block_forward.1} parent=11 // pred_fallthru
        _
      // Predicated region
      $region29: #{learn_vector_block_forward.1} parent=11 // pred_check
        %p240 = pneg %p145
      $region30: #{learn_vector_block_forward.1} parent=11 // pred_check_branch
        %242 = sbr.rel (%p240) target = $region32
      $region31: #{learn_vector_block_forward.1} parent=11 // pred_region
        _
      $region32: #{learn_vector_block_forward.1} parent=11 // pred_fallthru
        _
      // Predicated region
      $region33: #{learn_vector_block_forward.1} parent=11 // pred_check
        %p243 = pneg %p166
      $region34: #{learn_vector_block_forward.1} parent=11 // pred_check_branch
        %245 = sbr.rel (%p243) target = $region36
      $region35: #{learn_vector_block_forward.1} parent=11 // pred_region
        _
      $region36: #{learn_vector_block_forward.1} parent=11 // pred_fallthru
        _
      // Predicated region
      $region37: #{learn_vector_block_forward.1} parent=11 // pred_check
        %p246 = pneg %p187
      $region38: #{learn_vector_block_forward.1} parent=11 // pred_check_branch
        %248 = sbr.rel (%p246) target = $region40
      $region39: #{learn_vector_block_forward.1} parent=11 // pred_region
        _
      $region40: #{learn_vector_block_forward.1} parent=11 // pred_fallthru
        _
    $region12: #{learn_vector_block_forward.1} parent=5 // pred_fallthru
      _
    %p249 = scmp.lt.s32.totalorder %s14, 2
    // Predicated region
    $region41: #{learn_vector_block_forward.1} parent=5 // pred_check
      %p250 = pneg %p249
    $region42: #{learn_vector_block_forward.1} parent=5 // pred_check_branch
      %252 = sbr.rel (%p250) target = $region44
    $region43: #{learn_vector_block_forward.1} parent=5 // pred_region
      // Predicated region
      $region45: #{learn_vector_block_forward.1} parent=43 // pred_check
        %p253 = pneg %p34
      $region46: #{learn_vector_block_forward.1} parent=43 // pred_check_branch
        %255 = sbr.rel (%p253) target = $region48
      $region47: #{learn_vector_block_forward.1} parent=43 // pred_region
        %p256 = scmp.lt.s32.totalorder %s14, 1
        %s257 = scalar_select %p256, %s14, 1
        %s258 = smul.addr %s257, 10
        %s259 = smul.addr %s258, 4
        %s260 = scalar_lea.vmem %s0, %s259
      $region48: #{learn_vector_block_forward.1} parent=43 // pred_fallthru
        _
    $region44: #{learn_vector_block_forward.1} parent=5 // pred_fallthru
      _
    %p261 = scmp.le.s32.totalorder 1, %s14
    %p262 = scmp.lt.s32.totalorder %s14, 3
    %p263 = pnand %p261, %p262
    %p264 = pneg %p263
    // Predicated region
    $region49: #{learn_vector_block_forward.1} parent=5 // pred_check
      _
    $region50: #{learn_vector_block_forward.1} parent=5 // pred_check_branch
      %266 = sbr.rel (%p263) target = $region52
    $region51: #{learn_vector_block_forward.1} parent=5 // pred_region
      %s267 = ssub.s32 %s14, 1
      %p268 = scmp.lt.s32.totalorder %s19, 1
      %s269 = scalar_select %p268, %s19, 1
      %s270 = smul.addr %s269, 10
      %s271 = smul.addr %s270, 4
      %s272 = scalar_lea.vmem %s0, %s271
      %p273 = pneg %p40
      %p274 = pneg %p37
      %p275 = pneg %p61
      %p276 = pneg %p58
      %p277 = pneg %p82
      %p278 = pneg %p79
      %p279 = pneg %p103
      %p280 = pneg %p100
      %p281 = pneg %p124
      %p282 = pneg %p121
      %p283 = pneg %p145
      %p284 = pneg %p142
      %p285 = pneg %p166
      %p286 = pneg %p163
      %p287 = pneg %p187
      %p288 = pneg %p184
      %p289 = pneg %p213
      %p290 = pneg %p210
      %p291 = scmp.lt.s32.totalorder %s19, 1
      %s292 = scalar_select %p291, %s19, 1
      %s293 = smul.addr %s292, 12
      %s294 = smul.addr %s293, 8
      %s295 = scalar_lea.vmem %s8, %s294
      %p296 = scmp.lt.s32.totalorder %s19, 1
      %s297 = scalar_select %p296, %s19, 1
      %s298 = smul.addr %s297, 10
      %s299 = smul.addr %s298, 4
      %s300 = scalar_lea.vmem %s0, %s299
      %p301 = scmp.lt.s32.totalorder %s19, 1
      %s302 = scalar_select %p301, %s19, 1
      %s303 = smul.addr %s302, 12
      %s304 = smul.addr %s303, 8
      %s305 = scalar_lea.vmem %s8, %s304
      %v307 = vld [vmem:[%s300] sm:$0xff]
      %v308 = vld [vmem:[%s300 + $0x8] sm:$0xff]
      %v309 = vld [vmem:[%s300 + $0x10] sm:$0xf]
      %v310 = vld [vmem:[%s300 + $0x14] sm:$0xff]
      %v311 = vld [vmem:[%s300 + $0x1c] sm:$0xff]
      %v312 = vld [vmem:[%s300 + $0x24] sm:$0xf]
      %v313 = vunpack.c.l.bf16 %v307
      %v314 = vunpack.c.h.bf16 %v307
      %v315 = vunpack.c.l.bf16 %v308
      %v316 = vunpack.c.h.bf16 %v308
      %v317 = vunpack.c.l.bf16 %v309
      %v318 = vunpack.c.l.bf16 %v310
      %v319 = vunpack.c.h.bf16 %v310
      %v320 = vunpack.c.l.bf16 %v311
      %v321 = vunpack.c.h.bf16 %v311
      %v322 = vunpack.c.l.bf16 %v312
      %v323 = vld [vmem:[%s3] sm:$0xff]
      %v324 = vld [vmem:[%s3 + $0x8] sm:$0xff]
      %326 = vset.pattern.permute.xlu0 0
      %327 = vperm.xlu0 %326, %v323
      %v328 = vpop.permute.xlu0 %327
      %331 = vset.pattern.permute.xlu0 0
      %332 = vperm.xlu0 %331, %v324
      %v333 = vpop.permute.xlu0 %332
      %v335 = vmul.f32 %v313, %v328
      %v336 = vmul.f32 %v314, %v328
      %v337 = vmul.f32 %v315, %v328
      %v338 = vmul.f32 %v316, %v328
      %v339 = vmul.f32 %v317, %v328
      %v340 = vmul.f32 %v318, %v333
      %v341 = vmul.f32 %v319, %v333
      %v342 = vmul.f32 %v320, %v333
      %v343 = vmul.f32 %v321, %v333
      %v344 = vmul.f32 %v322, %v333
      %v345 = vld [vmem:[%s4] sm:$0xff]
      %v346 = vld [vmem:[%s4 + $0x8] sm:$0xff]
      %348 = vset.pattern.permute.xlu0 0
      %349 = vperm.xlu0 %348, %v345
      %v350 = vpop.permute.xlu0 %349
      %353 = vset.pattern.permute.xlu0 0
      %354 = vperm.xlu0 %353, %v346
      %v355 = vpop.permute.xlu0 %354
      %v357 = vadd.f32 %v335, %v350
      %v358 = vadd.f32 %v336, %v350
      %v359 = vadd.f32 %v337, %v350
      %v360 = vadd.f32 %v338, %v350
      %v361 = vadd.f32 %v339, %v350
      %v362 = vadd.f32 %v340, %v355
      %v363 = vadd.f32 %v341, %v355
      %v364 = vadd.f32 %v342, %v355
      %v365 = vadd.f32 %v343, %v355
      %v366 = vadd.f32 %v344, %v355
      %v367 = vmax.f32 %v357, 0.0
      %v368 = vmax.f32 %v358, 0.0
      %v369 = vmax.f32 %v359, 0.0
      %v370 = vmax.f32 %v360, 0.0
      %v371 = vmax.f32 %v361, 0.0
      %v372 = vmax.f32 %v362, 0.0
      %v373 = vmax.f32 %v363, 0.0
      %v374 = vmax.f32 %v364, 0.0
      %v375 = vmax.f32 %v365, 0.0
      %v376 = vmax.f32 %v366, 0.0
      %v377 = vld [vmem:[%s7] sm:$0x1f]
      %v379 = vlaneseq
      %v380 = vshrl.u32 %v379, 7
      %v381 = vsub.s32 0, %v380
      %v382 = vrot.slane %v377, %v381
      %v383 = vlaneseq
      %v384 = vshrl.u32 %v383, 7
      %v385 = vsub.s32 1, %v384
      %v386 = vrot.slane %v377, %v385
      %v387 = vlaneseq
      %v388 = vshrl.u32 %v387, 7
      %v389 = vsub.s32 2, %v388
      %v390 = vrot.slane %v377, %v389
      %v391 = vlaneseq
      %v392 = vshrl.u32 %v391, 7
      %v393 = vsub.s32 3, %v392
      %v394 = vrot.slane %v377, %v393
      %v395 = vlaneseq
      %v396 = vshrl.u32 %v395, 7
      %v397 = vsub.s32 4, %v396
      %v398 = vrot.slane %v377, %v397
      %v404 = vmul.f32 %v367, %v382
      %v405 = vmul.f32 %v368, %v386
      %v406 = vmul.f32 %v369, %v390
      %v407 = vmul.f32 %v370, %v394
      %v408 = vmul.f32 %v371, %v398
      %v409 = vmul.f32 %v372, %v382
      %v410 = vmul.f32 %v373, %v386
      %v411 = vmul.f32 %v374, %v390
      %v412 = vmul.f32 %v375, %v394
      %v413 = vmul.f32 %v376, %v398
      %v414 = vpack.c.bf16 %v409, %v404
      %v415 = vpack.c.bf16 %v410, %v405
      %v416 = vpack.c.bf16 %v411, %v406
      %v417 = vpack.c.bf16 %v412, %v407
      %v418 = vpack.c.bf16 %v413, %v408
      %v424 = vunpack.c.l.b16 %v414
      %v425 = vunpack.c.l.b16 %v415
      %v426 = vunpack.c.l.b16 %v416
      %v427 = vunpack.c.l.b16 %v417
      %v428 = vunpack.c.l.b16 %v418
      %v429 = vunpack.c.h.b16 %v414
      %v430 = vunpack.c.h.b16 %v415
      %v431 = vunpack.c.h.b16 %v416
      %v432 = vunpack.c.h.b16 %v417
      %v433 = vunpack.c.h.b16 %v418
      %v434 = vpack.c.b16 %v425, %v424
      %v435 = vpack.c.b16 %v427, %v426
      %v436 = vpack.c.b16 %v428, %v428
      %v437 = vpack.c.b16 %v430, %v429
      %v438 = vpack.c.b16 %v432, %v431
      %v439 = vpack.c.b16 %v433, %v433
      %446 = vst [vmem:[#allocation2] sm:$0xff] %v434
      %447 = vst [vmem:[#allocation2 + $0x8] sm:$0xff] %v435
      %448 = vst [vmem:[#allocation2 + $0x10] sm:$0xf] %v436
      %449 = vst [vmem:[#allocation2 + $0x14] sm:$0xff] %v437
      %450 = vst [vmem:[#allocation2 + $0x1c] sm:$0xff] %v438
      %451 = vst [vmem:[#allocation2 + $0x24] sm:$0xf] %v439
      %v452 = vld [vmem:[#allocation2] sm:$0xff]
      %v453 = vld [vmem:[#allocation2 + $0x8] sm:$0xff]
      %v454 = vld [vmem:[#allocation2 + $0x14] sm:$0xff]
      %v455 = vld [vmem:[#allocation2 + $0x1c] sm:$0xff]
      %456 = vst [vmem:[#allocation3] sm:$0xff] %v452
      %457 = vst [vmem:[#allocation3 + $0x8] sm:$0xff] %v453
      %458 = vst [vmem:[#allocation3 + $0x10] sm:$0xff] %v454
      %459 = vst [vmem:[#allocation3 + $0x18] sm:$0xff] %v455
      %v460 = vld [vmem:[#allocation2] sm:$0xff]
      %v461 = vld [vmem:[#allocation2 + $0x8] sm:$0xff]
      %v462 = vld [vmem:[#allocation2 + $0x10] sm:$0xf]
      %v463 = vld [vmem:[#allocation2 + $0x14] sm:$0xff]
      %v464 = vld [vmem:[#allocation2 + $0x1c] sm:$0xff]
      %v465 = vld [vmem:[#allocation2 + $0x24] sm:$0xf]
      %472 = vrot.lane.b32.xlu0 %v460, 127
      %v473 = vpop.permute.xlu0 %472
      %474 = vrot.lane.b32.xlu0 %v461, 127
      %v475 = vpop.permute.xlu0 %474
      %476 = vrot.lane.b32.xlu0 %v462, 127
      %v477 = vpop.permute.xlu0 %476
      %478 = vrot.lane.b32.xlu0 %v463, 127
      %v479 = vpop.permute.xlu0 %478
      %480 = vrot.lane.b32.xlu0 %v464, 127
      %v481 = vpop.permute.xlu0 %480
      %482 = vrot.lane.b32.xlu0 %v465, 127
      %v483 = vpop.permute.xlu0 %482
      %v484 = vrot.slane %v473, 4
      %v485 = vrot.slane %v475, 4
      %v486 = vrot.slane %v477, 4
      %v487 = vrot.slane %v479, 4
      %v488 = vrot.slane %v481, 4
      %v489 = vrot.slane %v483, 4
      %vm490 = vcmask 1043456
      %v491 = vsel %vm490, %v484, %v485
      %vm492 = vcmask 1039360
      %v493 = vsel %vm492, %v473, %v491
      %v494 = vsel %vm490, %v485, %v486
      %v495 = vsel %vm492, %v475, %v494
      %v496 = vsel %vm490, %v487, %v488
      %v497 = vsel %vm492, %v479, %v496
      %v498 = vsel %vm490, %v488, %v489
      %v499 = vsel %vm492, %v481, %v498
      %504 = vst [vmem:[#allocation3 + $0x20] sm:$0xff] %v493
      %505 = vst [vmem:[#allocation3 + $0x28] sm:$0xff] %v495
      %506 = vst [vmem:[#allocation3 + $0x30] sm:$0xff] %v497
      %507 = vst [vmem:[#allocation3 + $0x38] sm:$0xff] %v499
      %v508 = vld [vmem:[#allocation2] sm:$0xff]
      %v509 = vld [vmem:[#allocation2 + $0x8] sm:$0xff]
      %v510 = vld [vmem:[#allocation2 + $0x10] sm:$0xf]
      %v511 = vld [vmem:[#allocation2 + $0x14] sm:$0xff]
      %v512 = vld [vmem:[#allocation2 + $0x1c] sm:$0xff]
      %v513 = vld [vmem:[#allocation2 + $0x24] sm:$0xf]
      %520 = vrot.lane.b32.xlu0 %v508, 126
      %v521 = vpop.permute.xlu0 %520
      %522 = vrot.lane.b32.xlu0 %v509, 126
      %v523 = vpop.permute.xlu0 %522
      %524 = vrot.lane.b32.xlu0 %v510, 126
      %v525 = vpop.permute.xlu0 %524
      %526 = vrot.lane.b32.xlu0 %v511, 126
      %v527 = vpop.permute.xlu0 %526
      %528 = vrot.lane.b32.xlu0 %v512, 126
      %v529 = vpop.permute.xlu0 %528
      %530 = vrot.lane.b32.xlu0 %v513, 126
      %v531 = vpop.permute.xlu0 %530
      %v532 = vrot.slane %v521, 4
      %v533 = vrot.slane %v523, 4
      %v534 = vrot.slane %v525, 4
      %v535 = vrot.slane %v527, 4
      %v536 = vrot.slane %v529, 4
      %v537 = vrot.slane %v531, 4
      %v538 = vsel %vm490, %v532, %v533
      %vm539 = vcmask 1031168
      %v540 = vsel %vm539, %v521, %v538
      %v541 = vsel %vm490, %v533, %v534
      %v542 = vsel %vm539, %v523, %v541
      %v543 = vsel %vm490, %v535, %v536
      %v544 = vsel %vm539, %v527, %v543
      %v545 = vsel %vm490, %v536, %v537
      %v546 = vsel %vm539, %v529, %v545
      %551 = vst [vmem:[#allocation3 + $0x40] sm:$0xff] %v540
      %552 = vst [vmem:[#allocation3 + $0x48] sm:$0xff] %v542
      %553 = vst [vmem:[#allocation3 + $0x50] sm:$0xff] %v544
      %554 = vst [vmem:[#allocation3 + $0x58] sm:$0xff] %v546
      %v555 = vld [vmem:[#allocation2] sm:$0xff]
      %v556 = vld [vmem:[#allocation2 + $0x8] sm:$0xff]
      %v557 = vld [vmem:[#allocation2 + $0x10] sm:$0xf]
      %v558 = vld [vmem:[#allocation2 + $0x14] sm:$0xff]
      %v559 = vld [vmem:[#allocation2 + $0x1c] sm:$0xff]
      %v560 = vld [vmem:[#allocation2 + $0x24] sm:$0xf]
      %567 = vrot.lane.b32.xlu0 %v555, 110
      %v568 = vpop.permute.xlu0 %567
      %569 = vrot.lane.b32.xlu0 %v556, 110
      %v570 = vpop.permute.xlu0 %569
      %571 = vrot.lane.b32.xlu0 %v557, 110
      %v572 = vpop.permute.xlu0 %571
      %573 = vrot.lane.b32.xlu0 %v558, 110
      %v574 = vpop.permute.xlu0 %573
      %575 = vrot.lane.b32.xlu0 %v559, 110
      %v576 = vpop.permute.xlu0 %575
      %577 = vrot.lane.b32.xlu0 %v560, 110
      %v578 = vpop.permute.xlu0 %577
      %v579 = vrot.slane %v568, 4
      %v580 = vrot.slane %v570, 4
      %v581 = vrot.slane %v572, 4
      %v582 = vrot.slane %v574, 4
      %v583 = vrot.slane %v576, 4
      %v584 = vrot.slane %v578, 4
      %v585 = vsel %vm490, %v579, %v580
      %vm586 = vcmask 900096
      %v587 = vsel %vm586, %v568, %v585
      %v588 = vsel %vm490, %v580, %v581
      %v589 = vsel %vm586, %v570, %v588
      %v590 = vsel %vm490, %v582, %v583
      %v591 = vsel %vm586, %v574, %v590
      %v592 = vsel %vm490, %v583, %v584
      %v593 = vsel %vm586, %v576, %v592
      %598 = vst [vmem:[#allocation3 + $0x60] sm:$0xff] %v587
      %599 = vst [vmem:[#allocation3 + $0x68] sm:$0xff] %v589
      %600 = vst [vmem:[#allocation3 + $0x70] sm:$0xff] %v591
      %601 = vst [vmem:[#allocation3 + $0x78] sm:$0xff] %v593
      %v602 = vld [vmem:[#allocation2] sm:$0xff]
      %v603 = vld [vmem:[#allocation2 + $0x8] sm:$0xff]
      %v604 = vld [vmem:[#allocation2 + $0x10] sm:$0xf]
      %v605 = vld [vmem:[#allocation2 + $0x14] sm:$0xff]
      %v606 = vld [vmem:[#allocation2 + $0x1c] sm:$0xff]
      %v607 = vld [vmem:[#allocation2 + $0x24] sm:$0xf]
      %614 = vrot.lane.b32.xlu0 %v602, 109
      %v615 = vpop.permute.xlu0 %614
      %616 = vrot.lane.b32.xlu0 %v603, 109
      %v617 = vpop.permute.xlu0 %616
      %618 = vrot.lane.b32.xlu0 %v604, 109
      %v619 = vpop.permute.xlu0 %618
      %620 = vrot.lane.b32.xlu0 %v605, 109
      %v621 = vpop.permute.xlu0 %620
      %622 = vrot.lane.b32.xlu0 %v606, 109
      %v623 = vpop.permute.xlu0 %622
      %624 = vrot.lane.b32.xlu0 %v607, 109
      %v625 = vpop.permute.xlu0 %624
      %v626 = vrot.slane %v615, 4
      %v627 = vrot.slane %v617, 4
      %v628 = vrot.slane %v619, 4
      %v629 = vrot.slane %v621, 4
      %v630 = vrot.slane %v623, 4
      %v631 = vrot.slane %v625, 4
      %v632 = vsel %vm490, %v626, %v627
      %vm633 = vcmask 891904
      %v634 = vsel %vm633, %v615, %v632
      %v635 = vsel %vm490, %v627, %v628
      %v636 = vsel %vm633, %v617, %v635
      %v637 = vsel %vm490, %v629, %v630
      %v638 = vsel %vm633, %v621, %v637
      %v639 = vsel %vm490, %v630, %v631
      %v640 = vsel %vm633, %v623, %v639
      %645 = vst [vmem:[#allocation3 + $0x80] sm:$0xff] %v634
      %646 = vst [vmem:[#allocation3 + $0x88] sm:$0xff] %v636
      %647 = vst [vmem:[#allocation3 + $0x90] sm:$0xff] %v638
      %648 = vst [vmem:[#allocation3 + $0x98] sm:$0xff] %v640
      %v649 = vld [vmem:[#allocation2] sm:$0xff]
      %v650 = vld [vmem:[#allocation2 + $0x8] sm:$0xff]
      %v651 = vld [vmem:[#allocation2 + $0x10] sm:$0xf]
      %v652 = vld [vmem:[#allocation2 + $0x14] sm:$0xff]
      %v653 = vld [vmem:[#allocation2 + $0x1c] sm:$0xff]
      %v654 = vld [vmem:[#allocation2 + $0x24] sm:$0xf]
      %661 = vrot.lane.b32.xlu0 %v649, 108
      %v662 = vpop.permute.xlu0 %661
      %663 = vrot.lane.b32.xlu0 %v650, 108
      %v664 = vpop.permute.xlu0 %663
      %665 = vrot.lane.b32.xlu0 %v651, 108
      %v666 = vpop.permute.xlu0 %665
      %667 = vrot.lane.b32.xlu0 %v652, 108
      %v668 = vpop.permute.xlu0 %667
      %669 = vrot.lane.b32.xlu0 %v653, 108
      %v670 = vpop.permute.xlu0 %669
      %671 = vrot.lane.b32.xlu0 %v654, 108
      %v672 = vpop.permute.xlu0 %671
      %v673 = vrot.slane %v662, 4
      %v674 = vrot.slane %v664, 4
      %v675 = vrot.slane %v666, 4
      %v676 = vrot.slane %v668, 4
      %v677 = vrot.slane %v670, 4
      %v678 = vrot.slane %v672, 4
      %v679 = vsel %vm490, %v673, %v674
      %vm680 = vcmask 883712
      %v681 = vsel %vm680, %v662, %v679
      %v682 = vsel %vm490, %v674, %v675
      %v683 = vsel %vm680, %v664, %v682
      %v684 = vsel %vm490, %v676, %v677
      %v685 = vsel %vm680, %v668, %v684
      %v686 = vsel %vm490, %v677, %v678
      %v687 = vsel %vm680, %v670, %v686
      %692 = vst [vmem:[#allocation3 + $0xa0] sm:$0xff] %v681
      %693 = vst [vmem:[#allocation3 + $0xa8] sm:$0xff] %v683
      %694 = vst [vmem:[#allocation3 + $0xb0] sm:$0xff] %v685
      %695 = vst [vmem:[#allocation3 + $0xb8] sm:$0xff] %v687
      %v696 = vld [vmem:[#allocation2] sm:$0xff]
      %v697 = vld [vmem:[#allocation2 + $0x8] sm:$0xff]
      %v698 = vld [vmem:[#allocation2 + $0x10] sm:$0xf]
      %v699 = vld [vmem:[#allocation2 + $0x14] sm:$0xff]
      %v700 = vld [vmem:[#allocation2 + $0x1c] sm:$0xff]
      %v701 = vld [vmem:[#allocation2 + $0x24] sm:$0xf]
      %708 = vrot.lane.b32.xlu0 %v696, 92
      %v709 = vpop.permute.xlu0 %708
      %710 = vrot.lane.b32.xlu0 %v697, 92
      %v711 = vpop.permute.xlu0 %710
      %712 = vrot.lane.b32.xlu0 %v698, 92
      %v713 = vpop.permute.xlu0 %712
      %714 = vrot.lane.b32.xlu0 %v699, 92
      %v715 = vpop.permute.xlu0 %714
      %716 = vrot.lane.b32.xlu0 %v700, 92
      %v717 = vpop.permute.xlu0 %716
      %718 = vrot.lane.b32.xlu0 %v701, 92
      %v719 = vpop.permute.xlu0 %718
      %v720 = vrot.slane %v709, 4
      %v721 = vrot.slane %v711, 4
      %v722 = vrot.slane %v713, 4
      %v723 = vrot.slane %v715, 4
      %v724 = vrot.slane %v717, 4
      %v725 = vrot.slane %v719, 4
      %v726 = vsel %vm490, %v720, %v721
      %vm727 = vcmask 752640
      %v728 = vsel %vm727, %v709, %v726
      %v729 = vsel %vm490, %v721, %v722
      %v730 = vsel %vm727, %v711, %v729
      %v731 = vsel %vm490, %v723, %v724
      %v732 = vsel %vm727, %v715, %v731
      %v733 = vsel %vm490, %v724, %v725
      %v734 = vsel %vm727, %v717, %v733
      %739 = vst [vmem:[#allocation3 + $0xc0] sm:$0xff] %v728
      %740 = vst [vmem:[#allocation3 + $0xc8] sm:$0xff] %v730
      %741 = vst [vmem:[#allocation3 + $0xd0] sm:$0xff] %v732
      %742 = vst [vmem:[#allocation3 + $0xd8] sm:$0xff] %v734
      %v743 = vld [vmem:[#allocation2] sm:$0xff]
      %v744 = vld [vmem:[#allocation2 + $0x8] sm:$0xff]
      %v745 = vld [vmem:[#allocation2 + $0x10] sm:$0xf]
      %v746 = vld [vmem:[#allocation2 + $0x14] sm:$0xff]
      %v747 = vld [vmem:[#allocation2 + $0x1c] sm:$0xff]
      %v748 = vld [vmem:[#allocation2 + $0x24] sm:$0xf]
      %755 = vrot.lane.b32.xlu0 %v743, 91
      %v756 = vpop.permute.xlu0 %755
      %757 = vrot.lane.b32.xlu0 %v744, 91
      %v758 = vpop.permute.xlu0 %757
      %759 = vrot.lane.b32.xlu0 %v745, 91
      %v760 = vpop.permute.xlu0 %759
      %761 = vrot.lane.b32.xlu0 %v746, 91
      %v762 = vpop.permute.xlu0 %761
      %763 = vrot.lane.b32.xlu0 %v747, 91
      %v764 = vpop.permute.xlu0 %763
      %765 = vrot.lane.b32.xlu0 %v748, 91
      %v766 = vpop.permute.xlu0 %765
      %v767 = vrot.slane %v756, 4
      %v768 = vrot.slane %v758, 4
      %v769 = vrot.slane %v760, 4
      %v770 = vrot.slane %v762, 4
      %v771 = vrot.slane %v764, 4
      %v772 = vrot.slane %v766, 4
      %v773 = vsel %vm490, %v767, %v768
      %vm774 = vcmask 744448
      %v775 = vsel %vm774, %v756, %v773
      %v776 = vsel %vm490, %v768, %v769
      %v777 = vsel %vm774, %v758, %v776
      %v778 = vsel %vm490, %v770, %v771
      %v779 = vsel %vm774, %v762, %v778
      %v780 = vsel %vm490, %v771, %v772
      %v781 = vsel %vm774, %v764, %v780
      %786 = vst [vmem:[#allocation3 + $0xe0] sm:$0xff] %v775
      %787 = vst [vmem:[#allocation3 + $0xe8] sm:$0xff] %v777
      %788 = vst [vmem:[#allocation3 + $0xf0] sm:$0xff] %v779
      %789 = vst [vmem:[#allocation3 + $0xf8] sm:$0xff] %v781
      %v790 = vld [vmem:[#allocation2] sm:$0xff]
      %v791 = vld [vmem:[#allocation2 + $0x8] sm:$0xff]
      %v792 = vld [vmem:[#allocation2 + $0x10] sm:$0xf]
      %v793 = vld [vmem:[#allocation2 + $0x14] sm:$0xff]
      %v794 = vld [vmem:[#allocation2 + $0x1c] sm:$0xff]
      %v795 = vld [vmem:[#allocation2 + $0x24] sm:$0xf]
      %802 = vrot.lane.b32.xlu0 %v790, 90
      %v803 = vpop.permute.xlu0 %802
      %804 = vrot.lane.b32.xlu0 %v791, 90
      %v805 = vpop.permute.xlu0 %804
      %806 = vrot.lane.b32.xlu0 %v792, 90
      %v807 = vpop.permute.xlu0 %806
      %808 = vrot.lane.b32.xlu0 %v793, 90
      %v809 = vpop.permute.xlu0 %808
      %810 = vrot.lane.b32.xlu0 %v794, 90
      %v811 = vpop.permute.xlu0 %810
      %812 = vrot.lane.b32.xlu0 %v795, 90
      %v813 = vpop.permute.xlu0 %812
      %v814 = vrot.slane %v803, 4
      %v815 = vrot.slane %v805, 4
      %v816 = vrot.slane %v807, 4
      %v817 = vrot.slane %v809, 4
      %v818 = vrot.slane %v811, 4
      %v819 = vrot.slane %v813, 4
      %v820 = vsel %vm490, %v814, %v815
      %vm821 = vcmask 736256
      %v822 = vsel %vm821, %v803, %v820
      %v823 = vsel %vm490, %v815, %v816
      %v824 = vsel %vm821, %v805, %v823
      %v825 = vsel %vm490, %v817, %v818
      %v826 = vsel %vm821, %v809, %v825
      %v827 = vsel %vm490, %v818, %v819
      %v828 = vsel %vm821, %v811, %v827
      %833 = vst [vmem:[#allocation3 + $0x100] sm:$0xff] %v822
      %834 = vst [vmem:[#allocation3 + $0x108] sm:$0xff] %v824
      %835 = vst [vmem:[#allocation3 + $0x110] sm:$0xff] %v826
      %836 = vst [vmem:[#allocation3 + $0x118] sm:$0xff] %v828
      %v837 = vld [vmem:[%s1] sm:$0xff]
      %v838 = vld [vmem:[%s1 + $0x8] sm:$0xff]
      %v839 = vld [vmem:[%s1 + $0x10] sm:$0xff]
      %v840 = vld [vmem:[%s1 + $0x18] sm:$0xff]
      %v841 = vld [vmem:[#allocation3] sm:$0xff]
      %v842 = vld [vmem:[#allocation3 + $0x8] sm:$0xff]
      %v843 = vld [vmem:[#allocation3 + $0x10] sm:$0xff]
      %v844 = vld [vmem:[#allocation3 + $0x18] sm:$0xff]
      %v845 = vld [vmem:[#allocation3 + $0x20] sm:$0xff]
      %v846 = vld [vmem:[#allocation3 + $0x28] sm:$0xff]
      %v847 = vld [vmem:[#allocation3 + $0x30] sm:$0xff]
      %v848 = vld [vmem:[#allocation3 + $0x38] sm:$0xff]
      %v849 = vld [vmem:[#allocation3 + $0x40] sm:$0xff]
      %v850 = vld [vmem:[#allocation3 + $0x48] sm:$0xff]
      %v851 = vld [vmem:[#allocation3 + $0x50] sm:$0xff]
      %v852 = vld [vmem:[#allocation3 + $0x58] sm:$0xff]
      %v853 = vld [vmem:[#allocation3 + $0x60] sm:$0xff]
      %v854 = vld [vmem:[#allocation3 + $0x68] sm:$0xff]
      %v855 = vld [vmem:[#allocation3 + $0x70] sm:$0xff]
      %v856 = vld [vmem:[#allocation3 + $0x78] sm:$0xff]
      %v857 = vld [vmem:[#allocation3 + $0x80] sm:$0xff]
      %v858 = vld [vmem:[#allocation3 + $0x88] sm:$0xff]
      %v859 = vld [vmem:[#allocation3 + $0x90] sm:$0xff]
      %v860 = vld [vmem:[#allocation3 + $0x98] sm:$0xff]
      %v861 = vld [vmem:[#allocation3 + $0xa0] sm:$0xff]
      %v862 = vld [vmem:[#allocation3 + $0xa8] sm:$0xff]
      %v863 = vld [vmem:[#allocation3 + $0xb0] sm:$0xff]
      %v864 = vld [vmem:[#allocation3 + $0xb8] sm:$0xff]
      %v865 = vld [vmem:[#allocation3 + $0xc0] sm:$0xff]
      %v866 = vld [vmem:[#allocation3 + $0xc8] sm:$0xff]
      %v867 = vld [vmem:[#allocation3 + $0xd0] sm:$0xff]
      %v868 = vld [vmem:[#allocation3 + $0xd8] sm:$0xff]
      %v869 = vld [vmem:[#allocation3 + $0xe0] sm:$0xff]
      %v870 = vld [vmem:[#allocation3 + $0xe8] sm:$0xff]
      %v871 = vld [vmem:[#allocation3 + $0xf0] sm:$0xff]
      %v872 = vld [vmem:[#allocation3 + $0xf8] sm:$0xff]
      %v873 = vld [vmem:[#allocation3 + $0x100] sm:$0xff]
      %v874 = vld [vmem:[#allocation3 + $0x108] sm:$0xff]
      %v875 = vld [vmem:[#allocation3 + $0x110] sm:$0xff]
      %v876 = vld [vmem:[#allocation3 + $0x118] sm:$0xff]
      %v881 = vunpack.c.l.b16 %v837
      %v882 = vunpack.c.h.b16 %v837
      %v883 = vunpack.c.l.b16 %v838
      %v884 = vunpack.c.h.b16 %v838
      %v885 = vunpack.c.l.b16 %v839
      %v886 = vunpack.c.h.b16 %v839
      %v887 = vunpack.c.l.b16 %v840
      %v888 = vunpack.c.h.b16 %v840
      %v889 = vpack.c.b16 %v883, %v881
      %v890 = vpack.c.b16 %v884, %v882
      %v891 = vpack.c.b16 %v887, %v885
      %v892 = vpack.c.b16 %v888, %v886
      %v931 = vunpack.c.l.b16 %v841
      %v932 = vunpack.c.h.b16 %v841
      %v933 = vunpack.c.l.b16 %v842
      %v934 = vunpack.c.h.b16 %v842
      %v935 = vunpack.c.l.b16 %v843
      %v936 = vunpack.c.h.b16 %v843
      %v937 = vunpack.c.l.b16 %v844
      %v938 = vunpack.c.h.b16 %v844
      %v939 = vunpack.c.l.b16 %v845
      %v940 = vunpack.c.h.b16 %v845
      %v941 = vunpack.c.l.b16 %v846
      %v942 = vunpack.c.h.b16 %v846
      %v943 = vunpack.c.l.b16 %v847
      %v944 = vunpack.c.h.b16 %v847
      %v945 = vunpack.c.l.b16 %v848
      %v946 = vunpack.c.h.b16 %v848
      %v947 = vunpack.c.l.b16 %v849
      %v948 = vunpack.c.h.b16 %v849
      %v949 = vunpack.c.l.b16 %v850
      %v950 = vunpack.c.h.b16 %v850
      %v951 = vunpack.c.l.b16 %v851
      %v952 = vunpack.c.h.b16 %v851
      %v953 = vunpack.c.l.b16 %v852
      %v954 = vunpack.c.h.b16 %v852
      %v955 = vunpack.c.l.b16 %v853
      %v956 = vunpack.c.h.b16 %v853
      %v957 = vunpack.c.l.b16 %v854
      %v958 = vunpack.c.h.b16 %v854
      %v959 = vunpack.c.l.b16 %v855
      %v960 = vunpack.c.h.b16 %v855
      %v961 = vunpack.c.l.b16 %v856
      %v962 = vunpack.c.h.b16 %v856
      %v963 = vunpack.c.l.b16 %v857
      %v964 = vunpack.c.h.b16 %v857
      %v965 = vunpack.c.l.b16 %v858
      %v966 = vunpack.c.h.b16 %v858
      %v967 = vunpack.c.l.b16 %v859
      %v968 = vunpack.c.h.b16 %v859
      %v969 = vunpack.c.l.b16 %v860
      %v970 = vunpack.c.h.b16 %v860
      %v971 = vunpack.c.l.b16 %v861
      %v972 = vunpack.c.h.b16 %v861
      %v973 = vunpack.c.l.b16 %v862
      %v974 = vunpack.c.h.b16 %v862
      %v975 = vunpack.c.l.b16 %v863
      %v976 = vunpack.c.h.b16 %v863
      %v977 = vunpack.c.l.b16 %v864
      %v978 = vunpack.c.h.b16 %v864
      %v979 = vunpack.c.l.b16 %v865
      %v980 = vunpack.c.h.b16 %v865
      %v981 = vunpack.c.l.b16 %v866
      %v982 = vunpack.c.h.b16 %v866
      %v983 = vunpack.c.l.b16 %v867
      %v984 = vunpack.c.h.b16 %v867
      %v985 = vunpack.c.l.b16 %v868
      %v986 = vunpack.c.h.b16 %v868
      %v987 = vunpack.c.l.b16 %v869
      %v988 = vunpack.c.h.b16 %v869
      %v989 = vunpack.c.l.b16 %v870
      %v990 = vunpack.c.h.b16 %v870
      %v991 = vunpack.c.l.b16 %v871
      %v992 = vunpack.c.h.b16 %v871
      %v993 = vunpack.c.l.b16 %v872
      %v994 = vunpack.c.h.b16 %v872
      %v995 = vunpack.c.l.b16 %v873
      %v996 = vunpack.c.h.b16 %v873
      %v997 = vunpack.c.l.b16 %v874
      %v998 = vunpack.c.h.b16 %v874
      %v999 = vunpack.c.l.b16 %v875
      %v1000 = vunpack.c.h.b16 %v875
      %v1001 = vunpack.c.l.b16 %v876
      %v1002 = vunpack.c.h.b16 %v876
      %v1003 = vpack.c.b16 %v935, %v931
      %v1004 = vpack.c.b16 %v936, %v932
      %v1005 = vpack.c.b16 %v937, %v933
      %v1006 = vpack.c.b16 %v938, %v934
      %v1007 = vpack.c.b16 %v943, %v939
      %v1008 = vpack.c.b16 %v944, %v940
      %v1009 = vpack.c.b16 %v945, %v941
      %v1010 = vpack.c.b16 %v946, %v942
      %v1011 = vpack.c.b16 %v951, %v947
      %v1012 = vpack.c.b16 %v952, %v948
      %v1013 = vpack.c.b16 %v953, %v949
      %v1014 = vpack.c.b16 %v954, %v950
      %v1015 = vpack.c.b16 %v959, %v955
      %v1016 = vpack.c.b16 %v960, %v956
      %v1017 = vpack.c.b16 %v961, %v957
      %v1018 = vpack.c.b16 %v962, %v958
      %v1019 = vpack.c.b16 %v967, %v963
      %v1020 = vpack.c.b16 %v968, %v964
      %v1021 = vpack.c.b16 %v969, %v965
      %v1022 = vpack.c.b16 %v970, %v966
      %v1023 = vpack.c.b16 %v975, %v971
      %v1024 = vpack.c.b16 %v976, %v972
      %v1025 = vpack.c.b16 %v977, %v973
      %v1026 = vpack.c.b16 %v978, %v974
      %v1027 = vpack.c.b16 %v983, %v979
      %v1028 = vpack.c.b16 %v984, %v980
      %v1029 = vpack.c.b16 %v985, %v981
      %v1030 = vpack.c.b16 %v986, %v982
      %v1031 = vpack.c.b16 %v991, %v987
      %v1032 = vpack.c.b16 %v992, %v988
      %v1033 = vpack.c.b16 %v993, %v989
      %v1034 = vpack.c.b16 %v994, %v990
      %v1035 = vpack.c.b16 %v999, %v995
      %v1036 = vpack.c.b16 %v1000, %v996
      %v1037 = vpack.c.b16 %v1001, %v997
      %v1038 = vpack.c.b16 %v1002, %v998
      %vm1075 = vcmask 130048
      %v1077 = vsel %vm1075, %v890, 0
      %v1080 = vsel %vm1075, %v892, 0
      %1082 = vmatprep.subr.bf16.mxu0 %v1032
      %1083 = vmatpush1.bf16.msra.mxu0 %v1031
      %1084 = vmatprep.subr.bf16.mxu0 %v1028
      %1085 = vmatpush1.bf16.msra.mxu0 %v1027
      %1086 = vmatprep.subr.bf16.mxu0 %v1024
      %1087 = vmatpush1.bf16.msra.mxu0 %v1023
      %1088 = vmatprep.subr.bf16.mxu0 %v1020
      %1089 = vmatpush1.bf16.msra.mxu0 %v1019
      %1090 = vmatprep.subr.bf16.mxu0 %v1016
      %1091 = vmatpush1.bf16.msra.mxu0 %v1015
      %1092 = vmatprep.subr.bf16.mxu0 %v1012
      %1093 = vmatpush1.bf16.msra.mxu0 %v1011
      %1094 = vmatprep.subr.bf16.mxu0 %v1008
      %1095 = vmatpush1.bf16.msra.mxu0 %v1007
      %1096 = vmatprep.subr.bf16.mxu0 %v1004
      %1097 = vmatpush1.bf16.msra.mxu0 %v1003
      %1098 = vmatprep.subr.bf16.mxu0 0
      %1099 = vmatpush2.bf16.msra.mxu0 0
      %1100 = vmatprep.subr.bf16.mxu0 0
      %1101 = vmatpush2.bf16.msra.mxu0 0
      %1102 = vmatprep.subr.bf16.mxu0 0
      %1103 = vmatpush2.bf16.msra.mxu0 0
      %1104 = vmatprep.subr.bf16.mxu0 0
      %1105 = vmatpush2.bf16.msra.mxu0 0
      %1106 = vmatprep.subr.bf16.mxu0 0
      %1107 = vmatpush2.bf16.msra.mxu0 0
      %1108 = vmatprep.subr.bf16.mxu0 0
      %1109 = vmatpush2.bf16.msra.mxu0 0
      %1110 = vmatprep.subr.bf16.mxu0 0
      %1111 = vmatpush2.bf16.msra.mxu0 0
      %1112 = vmatprep.subr.bf16.mxu0 %v1036
      %1113 = vmatpush2.bf16.msra.mxu0 %v1035
      %1114 = vmatprep.mubr.bf16.mxu0 %v1077
      %1115 = vmatmul.mubr.bf16.gmra.mxu0 %v889
      %v1116 = vpop.f32.mrf.mxu0
      %v1117 = vadd.f32 0.0, %v1116
      %v1118 = vpop.f32.mrf.mxu0
      %v1119 = vadd.f32 0.0, %v1118
      %v1120 = vpop.f32.mrf.mxu0
      %v1121 = vadd.f32 0.0, %v1120
      %v1122 = vpop.f32.mrf.mxu0
      %v1123 = vadd.f32 0.0, %v1122
      %1124 = vmatprep.mubr.bf16.mxu0 %v1080
      %1125 = vmatmul.mubr.bf16.gmra.mxu0 %v891
      %v1126 = vpop.f32.mrf.mxu0
      %v1127 = vadd.f32 0.0, %v1126
      %v1128 = vpop.f32.mrf.mxu0
      %v1129 = vadd.f32 0.0, %v1128
      %v1130 = vpop.f32.mrf.mxu0
      %v1131 = vadd.f32 0.0, %v1130
      %v1132 = vpop.f32.mrf.mxu0
      %v1133 = vadd.f32 0.0, %v1132
      %1134 = vdwg.mxu0
      %1135 = vmatprep.subr.bf16.mxu0 %v1034
      %1136 = vmatpush1.bf16.msra.mxu0 %v1033
      %1137 = vmatprep.subr.bf16.mxu0 %v1030
      %1138 = vmatpush1.bf16.msra.mxu0 %v1029
      %1139 = vmatprep.subr.bf16.mxu0 %v1026
      %1140 = vmatpush1.bf16.msra.mxu0 %v1025
      %1141 = vmatprep.subr.bf16.mxu0 %v1022
      %1142 = vmatpush1.bf16.msra.mxu0 %v1021
      %1143 = vmatprep.subr.bf16.mxu0 %v1018
      %1144 = vmatpush1.bf16.msra.mxu0 %v1017
      %1145 = vmatprep.subr.bf16.mxu0 %v1014
      %1146 = vmatpush1.bf16.msra.mxu0 %v1013
      %1147 = vmatprep.subr.bf16.mxu0 %v1010
      %1148 = vmatpush1.bf16.msra.mxu0 %v1009
      %1149 = vmatprep.subr.bf16.mxu0 %v1006
      %1150 = vmatpush1.bf16.msra.mxu0 %v1005
      %1151 = vmatprep.subr.bf16.mxu0 0
      %1152 = vmatpush2.bf16.msra.mxu0 0
      %1153 = vmatprep.subr.bf16.mxu0 0
      %1154 = vmatpush2.bf16.msra.mxu0 0
      %1155 = vmatprep.subr.bf16.mxu0 0
      %1156 = vmatpush2.bf16.msra.mxu0 0
      %1157 = vmatprep.subr.bf16.mxu0 0
      %1158 = vmatpush2.bf16.msra.mxu0 0
      %1159 = vmatprep.subr.bf16.mxu0 0
      %1160 = vmatpush2.bf16.msra.mxu0 0
      %1161 = vmatprep.subr.bf16.mxu0 0
      %1162 = vmatpush2.bf16.msra.mxu0 0
      %1163 = vmatprep.subr.bf16.mxu0 0
      %1164 = vmatpush2.bf16.msra.mxu0 0
      %1165 = vmatprep.subr.bf16.mxu0 %v1038
      %1166 = vmatpush2.bf16.msra.mxu0 %v1037
      %1167 = vmatprep.mubr.bf16.mxu0 %v1077
      %1168 = vmatmul.mubr.bf16.gmra.mxu0 %v889
      %v1169 = vpop.f32.mrf.mxu0
      %v1170 = vadd.f32 0.0, %v1169
      %v1171 = vpop.f32.mrf.mxu0
      %v1172 = vadd.f32 0.0, %v1171
      %v1173 = vpop.f32.mrf.mxu0
      %v1174 = vadd.f32 0.0, %v1173
      %v1175 = vpop.f32.mrf.mxu0
      %v1176 = vadd.f32 0.0, %v1175
      %1177 = vmatprep.mubr.bf16.mxu0 %v1080
      %1178 = vmatmul.mubr.bf16.gmra.mxu0 %v891
      %v1179 = vpop.f32.mrf.mxu0
      %v1180 = vadd.f32 0.0, %v1179
      %v1181 = vpop.f32.mrf.mxu0
      %v1182 = vadd.f32 0.0, %v1181
      %v1183 = vpop.f32.mrf.mxu0
      %v1184 = vadd.f32 0.0, %v1183
      %v1185 = vpop.f32.mrf.mxu0
      %v1186 = vadd.f32 0.0, %v1185
      %1187 = vdwg.mxu0
      %v1188 = vld [vmem:[%s5] sm:$0xff]
      %v1189 = vld [vmem:[%s5 + $0x8] sm:$0xff]
      %v1190 = vld [vmem:[%s5 + $0x10] sm:$0xff]
      %v1191 = vld [vmem:[%s5 + $0x18] sm:$0xff]
      %1193 = vset.pattern.permute.xlu0 0
      %1194 = vperm.xlu0 %1193, %v1188
      %v1195 = vpop.permute.xlu0 %1194
      %1198 = vset.pattern.permute.xlu0 0
      %1199 = vperm.xlu0 %1198, %v1189
      %v1200 = vpop.permute.xlu0 %1199
      %1203 = vset.pattern.permute.xlu0 0
      %1204 = vperm.xlu0 %1203, %v1190
      %v1205 = vpop.permute.xlu0 %1204
      %1208 = vset.pattern.permute.xlu0 0
      %1209 = vperm.xlu0 %1208, %v1191
      %v1210 = vpop.permute.xlu0 %1209
      %v1212 = vmul.f32 %v1117, %v1195
      %v1213 = vmul.f32 %v1119, %v1195
      %v1214 = vmul.f32 %v1170, %v1195
      %v1215 = vmul.f32 %v1172, %v1195
      %v1216 = vmul.f32 %v1121, %v1200
      %v1217 = vmul.f32 %v1123, %v1200
      %v1218 = vmul.f32 %v1174, %v1200
      %v1219 = vmul.f32 %v1176, %v1200
      %v1220 = vmul.f32 %v1127, %v1205
      %v1221 = vmul.f32 %v1129, %v1205
      %v1222 = vmul.f32 %v1180, %v1205
      %v1223 = vmul.f32 %v1182, %v1205
      %v1224 = vmul.f32 %v1131, %v1210
      %v1225 = vmul.f32 %v1133, %v1210
      %v1226 = vmul.f32 %v1184, %v1210
      %v1227 = vmul.f32 %v1186, %v1210
      %v1228 = vld [vmem:[%s6] sm:$0xff]
      %v1229 = vld [vmem:[%s6 + $0x8] sm:$0xff]
      %v1230 = vld [vmem:[%s6 + $0x10] sm:$0xff]
      %v1231 = vld [vmem:[%s6 + $0x18] sm:$0xff]
      %1233 = vset.pattern.permute.xlu0 0
      %1234 = vperm.xlu0 %1233, %v1228
      %v1235 = vpop.permute.xlu0 %1234
      %1238 = vset.pattern.permute.xlu0 0
      %1239 = vperm.xlu0 %1238, %v1229
      %v1240 = vpop.permute.xlu0 %1239
      %1243 = vset.pattern.permute.xlu0 0
      %1244 = vperm.xlu0 %1243, %v1230
      %v1245 = vpop.permute.xlu0 %1244
      %1248 = vset.pattern.permute.xlu0 0
      %1249 = vperm.xlu0 %1248, %v1231
      %v1250 = vpop.permute.xlu0 %1249
      %v1252 = vadd.f32 %v1212, %v1235
      %v1253 = vadd.f32 %v1213, %v1235
      %v1254 = vadd.f32 %v1214, %v1235
      %v1255 = vadd.f32 %v1215, %v1235
      %v1256 = vadd.f32 %v1216, %v1240
      %v1257 = vadd.f32 %v1217, %v1240
      %v1258 = vadd.f32 %v1218, %v1240
      %v1259 = vadd.f32 %v1219, %v1240
      %v1260 = vadd.f32 %v1220, %v1245
      %v1261 = vadd.f32 %v1221, %v1245
      %v1262 = vadd.f32 %v1222, %v1245
      %v1263 = vadd.f32 %v1223, %v1245
      %v1264 = vadd.f32 %v1224, %v1250
      %v1265 = vadd.f32 %v1225, %v1250
      %v1266 = vadd.f32 %v1226, %v1250
      %v1267 = vadd.f32 %v1227, %v1250
      %v1268 = vmax.f32 %v1252, 0.0
      %v1269 = vmax.f32 %v1253, 0.0
      %v1270 = vmax.f32 %v1254, 0.0
      %v1271 = vmax.f32 %v1255, 0.0
      %v1272 = vmax.f32 %v1256, 0.0
      %v1273 = vmax.f32 %v1257, 0.0
      %v1274 = vmax.f32 %v1258, 0.0
      %v1275 = vmax.f32 %v1259, 0.0
      %v1276 = vmax.f32 %v1260, 0.0
      %v1277 = vmax.f32 %v1261, 0.0
      %v1278 = vmax.f32 %v1262, 0.0
      %v1279 = vmax.f32 %v1263, 0.0
      %v1280 = vmax.f32 %v1264, 0.0
      %v1281 = vmax.f32 %v1265, 0.0
      %v1282 = vmax.f32 %v1266, 0.0
      %v1283 = vmax.f32 %v1267, 0.0
      %v1284 = vld [vmem:[%s7] sm:$0x1f]
      %v1286 = vlaneseq
      %v1287 = vshrl.u32 %v1286, 7
      %v1288 = vsub.s32 0, %v1287
      %v1289 = vrot.slane %v1284, %v1288
      %v1290 = vlaneseq
      %v1291 = vshrl.u32 %v1290, 7
      %v1292 = vsub.s32 1, %v1291
      %v1293 = vrot.slane %v1284, %v1292
      %v1294 = vlaneseq
      %v1295 = vshrl.u32 %v1294, 7
      %v1296 = vsub.s32 2, %v1295
      %v1297 = vrot.slane %v1284, %v1296
      %v1298 = vlaneseq
      %v1299 = vshrl.u32 %v1298, 7
      %v1300 = vsub.s32 3, %v1299
      %v1301 = vrot.slane %v1284, %v1300
      %v1302 = vlaneseq
      %v1303 = vshrl.u32 %v1302, 7
      %v1304 = vsub.s32 4, %v1303
      %v1305 = vrot.slane %v1284, %v1304
      %1306 = vrot.lane.b32.xlu0 %v1289, 109
      %v1307 = vpop.permute.xlu0 %1306
      %1308 = vrot.lane.b32.xlu0 %v1293, 109
      %v1309 = vpop.permute.xlu0 %1308
      %1310 = vrot.lane.b32.xlu0 %v1297, 109
      %v1311 = vpop.permute.xlu0 %1310
      %1312 = vrot.lane.b32.xlu0 %v1301, 109
      %v1313 = vpop.permute.xlu0 %1312
      %1314 = vrot.lane.b32.xlu0 %v1305, 109
      %v1315 = vpop.permute.xlu0 %1314
      %vm1316 = vcmask 891904
      %v1317 = vsel %vm1316, %v1307, %v1309
      %v1318 = vsel %vm1316, %v1309, %v1311
      %v1319 = vsel %vm1316, %v1311, %v1313
      %v1320 = vsel %vm1316, %v1313, %v1315
      %v1325 = vmul.f32 %v1268, %v1317
      %v1326 = vmul.f32 %v1269, %v1318
      %v1327 = vmul.f32 %v1270, %v1319
      %v1328 = vmul.f32 %v1271, %v1320
      %v1329 = vmul.f32 %v1272, %v1317
      %v1330 = vmul.f32 %v1273, %v1318
      %v1331 = vmul.f32 %v1274, %v1319
      %v1332 = vmul.f32 %v1275, %v1320
      %v1333 = vmul.f32 %v1276, %v1317
      %v1334 = vmul.f32 %v1277, %v1318
      %v1335 = vmul.f32 %v1278, %v1319
      %v1336 = vmul.f32 %v1279, %v1320
      %v1337 = vmul.f32 %v1280, %v1317
      %v1338 = vmul.f32 %v1281, %v1318
      %v1339 = vmul.f32 %v1282, %v1319
      %v1340 = vmul.f32 %v1283, %v1320
      %v1341 = vpack.c.bf16 %v1329, %v1325
      %v1342 = vpack.c.bf16 %v1330, %v1326
      %v1343 = vpack.c.bf16 %v1331, %v1327
      %v1344 = vpack.c.bf16 %v1332, %v1328
      %v1345 = vpack.c.bf16 %v1337, %v1333
      %v1346 = vpack.c.bf16 %v1338, %v1334
      %v1347 = vpack.c.bf16 %v1339, %v1335
      %v1348 = vpack.c.bf16 %v1340, %v1336
      %v1357 = vunpack.c.l.b16 %v1341
      %v1358 = vunpack.c.l.b16 %v1342
      %v1359 = vunpack.c.l.b16 %v1343
      %v1360 = vunpack.c.l.b16 %v1344
      %v1361 = vunpack.c.h.b16 %v1341
      %v1362 = vunpack.c.h.b16 %v1342
      %v1363 = vunpack.c.h.b16 %v1343
      %v1364 = vunpack.c.h.b16 %v1344
      %v1365 = vunpack.c.l.b16 %v1345
      %v1366 = vunpack.c.l.b16 %v1346
      %v1367 = vunpack.c.l.b16 %v1347
      %v1368 = vunpack.c.l.b16 %v1348
      %v1369 = vunpack.c.h.b16 %v1345
      %v1370 = vunpack.c.h.b16 %v1346
      %v1371 = vunpack.c.h.b16 %v1347
      %v1372 = vunpack.c.h.b16 %v1348
      %v1373 = vpack.c.b16 %v1358, %v1357
      %v1374 = vpack.c.b16 %v1360, %v1359
      %v1375 = vpack.c.b16 %v1362, %v1361
      %v1376 = vpack.c.b16 %v1364, %v1363
      %v1377 = vpack.c.b16 %v1366, %v1365
      %v1378 = vpack.c.b16 %v1368, %v1367
      %v1379 = vpack.c.b16 %v1370, %v1369
      %v1380 = vpack.c.b16 %v1372, %v1371
      %1389 = vst [vmem:[#allocation4] sm:$0xff] %v1373
      %1390 = vst [vmem:[#allocation4 + $0x8] sm:$0xff] %v1374
      %1391 = vst [vmem:[#allocation4 + $0x10] sm:$0xff] %v1375
      %1392 = vst [vmem:[#allocation4 + $0x18] sm:$0xff] %v1376
      %1393 = vst [vmem:[#allocation4 + $0x20] sm:$0xff] %v1377
      %1394 = vst [vmem:[#allocation4 + $0x28] sm:$0xff] %v1378
      %1395 = vst [vmem:[#allocation4 + $0x30] sm:$0xff] %v1379
      %1396 = vst [vmem:[#allocation4 + $0x38] sm:$0xff] %v1380
      %v1397 = vld [vmem:[#allocation4] sm:$0xff]
      %v1398 = vld [vmem:[#allocation4 + $0x8] sm:$0xf]
      %v1399 = vld [vmem:[#allocation4 + $0x10] sm:$0xff]
      %v1400 = vld [vmem:[#allocation4 + $0x18] sm:$0xf]
      %v1401 = vld [vmem:[#allocation4 + $0x20] sm:$0xff]
      %v1402 = vld [vmem:[#allocation4 + $0x28] sm:$0xf]
      %v1403 = vld [vmem:[#allocation4 + $0x30] sm:$0xff]
      %v1404 = vld [vmem:[#allocation4 + $0x38] sm:$0xf]
      %1405 = vst [vmem:[#allocation5] sm:$0xff] %v1397
      %1406 = vst [vmem:[#allocation5 + $0x8] sm:$0xf] %v1398
      %1407 = vst [vmem:[#allocation5 + $0xc] sm:$0xff] %v1399
      %1408 = vst [vmem:[#allocation5 + $0x14] sm:$0xf] %v1400
      %1409 = vst [vmem:[#allocation5 + $0x18] sm:$0xff] %v1401
      %1410 = vst [vmem:[#allocation5 + $0x20] sm:$0xf] %v1402
      %1411 = vst [vmem:[#allocation5 + $0x24] sm:$0xff] %v1403
      %1412 = vst [vmem:[#allocation5 + $0x2c] sm:$0xf] %v1404
      %v1413 = vld [vmem:[#allocation4] sm:$0xff]
      %v1414 = vld [vmem:[#allocation4 + $0x8] sm:$0xff]
      %v1415 = vld [vmem:[#allocation4 + $0x10] sm:$0xff]
      %v1416 = vld [vmem:[#allocation4 + $0x18] sm:$0xff]
      %v1417 = vld [vmem:[#allocation4 + $0x20] sm:$0xff]
      %v1418 = vld [vmem:[#allocation4 + $0x28] sm:$0xff]
      %v1419 = vld [vmem:[#allocation4 + $0x30] sm:$0xff]
      %v1420 = vld [vmem:[#allocation4 + $0x38] sm:$0xff]
      %1429 = vrot.lane.b32.xlu0 %v1413, 127
      %v1430 = vpop.permute.xlu0 %1429
      %1431 = vrot.lane.b32.xlu0 %v1414, 127
      %v1432 = vpop.permute.xlu0 %1431
      %1433 = vrot.lane.b32.xlu0 %v1415, 127
      %v1434 = vpop.permute.xlu0 %1433
      %1435 = vrot.lane.b32.xlu0 %v1416, 127
      %v1436 = vpop.permute.xlu0 %1435
      %1437 = vrot.lane.b32.xlu0 %v1417, 127
      %v1438 = vpop.permute.xlu0 %1437
      %1439 = vrot.lane.b32.xlu0 %v1418, 127
      %v1440 = vpop.permute.xlu0 %1439
      %1441 = vrot.lane.b32.xlu0 %v1419, 127
      %v1442 = vpop.permute.xlu0 %1441
      %1443 = vrot.lane.b32.xlu0 %v1420, 127
      %v1444 = vpop.permute.xlu0 %1443
      %v1445 = vrot.slane %v1430, 4
      %v1446 = vrot.slane %v1432, 4
      %v1447 = vrot.slane %v1434, 4
      %v1448 = vrot.slane %v1436, 4
      %v1449 = vrot.slane %v1438, 4
      %v1450 = vrot.slane %v1440, 4
      %v1451 = vrot.slane %v1442, 4
      %v1452 = vrot.slane %v1444, 4
      %v1453 = vsel %vm490, %v1445, %v1446
      %v1454 = vsel %vm492, %v1430, %v1453
      %v1455 = vsel %vm492, %v1432, %v1446
      %v1456 = vsel %vm490, %v1447, %v1448
      %v1457 = vsel %vm492, %v1434, %v1456
      %v1458 = vsel %vm492, %v1436, %v1448
      %v1459 = vsel %vm490, %v1449, %v1450
      %v1460 = vsel %vm492, %v1438, %v1459
      %v1461 = vsel %vm492, %v1440, %v1450
      %v1462 = vsel %vm490, %v1451, %v1452
      %v1463 = vsel %vm492, %v1442, %v1462
      %v1464 = vsel %vm492, %v1444, %v1452
      %1473 = vst [vmem:[#allocation5 + $0x30] sm:$0xff] %v1454
      %1474 = vst [vmem:[#allocation5 + $0x38] sm:$0xf] %v1455
      %1475 = vst [vmem:[#allocation5 + $0x3c] sm:$0xff] %v1457
      %1476 = vst [vmem:[#allocation5 + $0x44] sm:$0xf] %v1458
      %1477 = vst [vmem:[#allocation5 + $0x48] sm:$0xff] %v1460
      %1478 = vst [vmem:[#allocation5 + $0x50] sm:$0xf] %v1461
      %1479 = vst [vmem:[#allocation5 + $0x54] sm:$0xff] %v1463
      %1480 = vst [vmem:[#allocation5 + $0x5c] sm:$0xf] %v1464
      %v1481 = vld [vmem:[#allocation4] sm:$0xff]
      %v1482 = vld [vmem:[#allocation4 + $0x8] sm:$0xff]
      %v1483 = vld [vmem:[#allocation4 + $0x10] sm:$0xff]
      %v1484 = vld [vmem:[#allocation4 + $0x18] sm:$0xff]
      %v1485 = vld [vmem:[#allocation4 + $0x20] sm:$0xff]
      %v1486 = vld [vmem:[#allocation4 + $0x28] sm:$0xff]
      %v1487 = vld [vmem:[#allocation4 + $0x30] sm:$0xff]
      %v1488 = vld [vmem:[#allocation4 + $0x38] sm:$0xff]
      %1497 = vrot.lane.b32.xlu0 %v1481, 126
      %v1498 = vpop.permute.xlu0 %1497
      %1499 = vrot.lane.b32.xlu0 %v1482, 126
      %v1500 = vpop.permute.xlu0 %1499
      %1501 = vrot.lane.b32.xlu0 %v1483, 126
      %v1502 = vpop.permute.xlu0 %1501
      %1503 = vrot.lane.b32.xlu0 %v1484, 126
      %v1504 = vpop.permute.xlu0 %1503
      %1505 = vrot.lane.b32.xlu0 %v1485, 126
      %v1506 = vpop.permute.xlu0 %1505
      %1507 = vrot.lane.b32.xlu0 %v1486, 126
      %v1508 = vpop.permute.xlu0 %1507
      %1509 = vrot.lane.b32.xlu0 %v1487, 126
      %v1510 = vpop.permute.xlu0 %1509
      %1511 = vrot.lane.b32.xlu0 %v1488, 126
      %v1512 = vpop.permute.xlu0 %1511
      %v1513 = vrot.slane %v1498, 4
      %v1514 = vrot.slane %v1500, 4
      %v1515 = vrot.slane %v1502, 4
      %v1516 = vrot.slane %v1504, 4
      %v1517 = vrot.slane %v1506, 4
      %v1518 = vrot.slane %v1508, 4
      %v1519 = vrot.slane %v1510, 4
      %v1520 = vrot.slane %v1512, 4
      %v1521 = vsel %vm490, %v1513, %v1514
      %v1522 = vsel %vm539, %v1498, %v1521
      %v1523 = vsel %vm539, %v1500, %v1514
      %v1524 = vsel %vm490, %v1515, %v1516
      %v1525 = vsel %vm539, %v1502, %v1524
      %v1526 = vsel %vm539, %v1504, %v1516
      %v1527 = vsel %vm490, %v1517, %v1518
      %v1528 = vsel %vm539, %v1506, %v1527
      %v1529 = vsel %vm539, %v1508, %v1518
      %v1530 = vsel %vm490, %v1519, %v1520
      %v1531 = vsel %vm539, %v1510, %v1530
      %v1532 = vsel %vm539, %v1512, %v1520
      %1541 = vst [vmem:[#allocation5 + $0x60] sm:$0xff] %v1522
      %1542 = vst [vmem:[#allocation5 + $0x68] sm:$0xf] %v1523
      %1543 = vst [vmem:[#allocation5 + $0x6c] sm:$0xff] %v1525
      %1544 = vst [vmem:[#allocation5 + $0x74] sm:$0xf] %v1526
      %1545 = vst [vmem:[#allocation5 + $0x78] sm:$0xff] %v1528
      %1546 = vst [vmem:[#allocation5 + $0x80] sm:$0xf] %v1529
      %1547 = vst [vmem:[#allocation5 + $0x84] sm:$0xff] %v1531
      %1548 = vst [vmem:[#allocation5 + $0x8c] sm:$0xf] %v1532
      %v1549 = vld [vmem:[#allocation4] sm:$0xff]
      %v1550 = vld [vmem:[#allocation4 + $0x8] sm:$0xff]
      %v1551 = vld [vmem:[#allocation4 + $0x10] sm:$0xff]
      %v1552 = vld [vmem:[#allocation4 + $0x18] sm:$0xff]
      %v1553 = vld [vmem:[#allocation4 + $0x20] sm:$0xff]
      %v1554 = vld [vmem:[#allocation4 + $0x28] sm:$0xff]
      %v1555 = vld [vmem:[#allocation4 + $0x30] sm:$0xff]
      %v1556 = vld [vmem:[#allocation4 + $0x38] sm:$0xff]
      %1565 = vrot.lane.b32.xlu0 %v1549, 110
      %v1566 = vpop.permute.xlu0 %1565
      %1567 = vrot.lane.b32.xlu0 %v1550, 110
      %v1568 = vpop.permute.xlu0 %1567
      %1569 = vrot.lane.b32.xlu0 %v1551, 110
      %v1570 = vpop.permute.xlu0 %1569
      %1571 = vrot.lane.b32.xlu0 %v1552, 110
      %v1572 = vpop.permute.xlu0 %1571
      %1573 = vrot.lane.b32.xlu0 %v1553, 110
      %v1574 = vpop.permute.xlu0 %1573
      %1575 = vrot.lane.b32.xlu0 %v1554, 110
      %v1576 = vpop.permute.xlu0 %1575
      %1577 = vrot.lane.b32.xlu0 %v1555, 110
      %v1578 = vpop.permute.xlu0 %1577
      %1579 = vrot.lane.b32.xlu0 %v1556, 110
      %v1580 = vpop.permute.xlu0 %1579
      %v1581 = vrot.slane %v1566, 4
      %v1582 = vrot.slane %v1568, 4
      %v1583 = vrot.slane %v1570, 4
      %v1584 = vrot.slane %v1572, 4
      %v1585 = vrot.slane %v1574, 4
      %v1586 = vrot.slane %v1576, 4
      %v1587 = vrot.slane %v1578, 4
      %v1588 = vrot.slane %v1580, 4
      %v1589 = vsel %vm490, %v1581, %v1582
      %v1590 = vsel %vm586, %v1566, %v1589
      %v1591 = vsel %vm586, %v1568, %v1582
      %v1592 = vsel %vm490, %v1583, %v1584
      %v1593 = vsel %vm586, %v1570, %v1592
      %v1594 = vsel %vm586, %v1572, %v1584
      %v1595 = vsel %vm490, %v1585, %v1586
      %v1596 = vsel %vm586, %v1574, %v1595
      %v1597 = vsel %vm586, %v1576, %v1586
      %v1598 = vsel %vm490, %v1587, %v1588
      %v1599 = vsel %vm586, %v1578, %v1598
      %v1600 = vsel %vm586, %v1580, %v1588
      %1609 = vst [vmem:[#allocation5 + $0x90] sm:$0xff] %v1590
      %1610 = vst [vmem:[#allocation5 + $0x98] sm:$0xf] %v1591
      %1611 = vst [vmem:[#allocation5 + $0x9c] sm:$0xff] %v1593
      %1612 = vst [vmem:[#allocation5 + $0xa4] sm:$0xf] %v1594
      %1613 = vst [vmem:[#allocation5 + $0xa8] sm:$0xff] %v1596
      %1614 = vst [vmem:[#allocation5 + $0xb0] sm:$0xf] %v1597
      %1615 = vst [vmem:[#allocation5 + $0xb4] sm:$0xff] %v1599
      %1616 = vst [vmem:[#allocation5 + $0xbc] sm:$0xf] %v1600
      %v1617 = vld [vmem:[#allocation4] sm:$0xff]
      %v1618 = vld [vmem:[#allocation4 + $0x8] sm:$0xff]
      %v1619 = vld [vmem:[#allocation4 + $0x10] sm:$0xff]
      %v1620 = vld [vmem:[#allocation4 + $0x18] sm:$0xff]
      %v1621 = vld [vmem:[#allocation4 + $0x20] sm:$0xff]
      %v1622 = vld [vmem:[#allocation4 + $0x28] sm:$0xff]
      %v1623 = vld [vmem:[#allocation4 + $0x30] sm:$0xff]
      %v1624 = vld [vmem:[#allocation4 + $0x38] sm:$0xff]
      %1633 = vrot.lane.b32.xlu0 %v1617, 109
      %v1634 = vpop.permute.xlu0 %1633
      %1635 = vrot.lane.b32.xlu0 %v1618, 109
      %v1636 = vpop.permute.xlu0 %1635
      %1637 = vrot.lane.b32.xlu0 %v1619, 109
      %v1638 = vpop.permute.xlu0 %1637
      %1639 = vrot.lane.b32.xlu0 %v1620, 109
      %v1640 = vpop.permute.xlu0 %1639
      %1641 = vrot.lane.b32.xlu0 %v1621, 109
      %v1642 = vpop.permute.xlu0 %1641
      %1643 = vrot.lane.b32.xlu0 %v1622, 109
      %v1644 = vpop.permute.xlu0 %1643
      %1645 = vrot.lane.b32.xlu0 %v1623, 109
      %v1646 = vpop.permute.xlu0 %1645
      %1647 = vrot.lane.b32.xlu0 %v1624, 109
      %v1648 = vpop.permute.xlu0 %1647
      %v1649 = vrot.slane %v1634, 4
      %v1650 = vrot.slane %v1636, 4
      %v1651 = vrot.slane %v1638, 4
      %v1652 = vrot.slane %v1640, 4
      %v1653 = vrot.slane %v1642, 4
      %v1654 = vrot.slane %v1644, 4
      %v1655 = vrot.slane %v1646, 4
      %v1656 = vrot.slane %v1648, 4
      %v1657 = vsel %vm490, %v1649, %v1650
      %v1658 = vsel %vm633, %v1634, %v1657
      %v1659 = vsel %vm633, %v1636, %v1650
      %v1660 = vsel %vm490, %v1651, %v1652
      %v1661 = vsel %vm633, %v1638, %v1660
      %v1662 = vsel %vm633, %v1640, %v1652
      %v1663 = vsel %vm490, %v1653, %v1654
      %v1664 = vsel %vm633, %v1642, %v1663
      %v1665 = vsel %vm633, %v1644, %v1654
      %v1666 = vsel %vm490, %v1655, %v1656
      %v1667 = vsel %vm633, %v1646, %v1666
      %v1668 = vsel %vm633, %v1648, %v1656
      %1677 = vst [vmem:[#allocation5 + $0xc0] sm:$0xff] %v1658
      %1678 = vst [vmem:[#allocation5 + $0xc8] sm:$0xf] %v1659
      %1679 = vst [vmem:[#allocation5 + $0xcc] sm:$0xff] %v1661
      %1680 = vst [vmem:[#allocation5 + $0xd4] sm:$0xf] %v1662
      %1681 = vst [vmem:[#allocation5 + $0xd8] sm:$0xff] %v1664
      %1682 = vst [vmem:[#allocation5 + $0xe0] sm:$0xf] %v1665
      %1683 = vst [vmem:[#allocation5 + $0xe4] sm:$0xff] %v1667
      %1684 = vst [vmem:[#allocation5 + $0xec] sm:$0xf] %v1668
      %v1685 = vld [vmem:[#allocation4] sm:$0xff]
      %v1686 = vld [vmem:[#allocation4 + $0x8] sm:$0xff]
      %v1687 = vld [vmem:[#allocation4 + $0x10] sm:$0xff]
      %v1688 = vld [vmem:[#allocation4 + $0x18] sm:$0xff]
      %v1689 = vld [vmem:[#allocation4 + $0x20] sm:$0xff]
      %v1690 = vld [vmem:[#allocation4 + $0x28] sm:$0xff]
      %v1691 = vld [vmem:[#allocation4 + $0x30] sm:$0xff]
      %v1692 = vld [vmem:[#allocation4 + $0x38] sm:$0xff]
      %1701 = vrot.lane.b32.xlu0 %v1685, 108
      %v1702 = vpop.permute.xlu0 %1701
      %1703 = vrot.lane.b32.xlu0 %v1686, 108
      %v1704 = vpop.permute.xlu0 %1703
      %1705 = vrot.lane.b32.xlu0 %v1687, 108
      %v1706 = vpop.permute.xlu0 %1705
      %1707 = vrot.lane.b32.xlu0 %v1688, 108
      %v1708 = vpop.permute.xlu0 %1707
      %1709 = vrot.lane.b32.xlu0 %v1689, 108
      %v1710 = vpop.permute.xlu0 %1709
      %1711 = vrot.lane.b32.xlu0 %v1690, 108
      %v1712 = vpop.permute.xlu0 %1711
      %1713 = vrot.lane.b32.xlu0 %v1691, 108
      %v1714 = vpop.permute.xlu0 %1713
      %1715 = vrot.lane.b32.xlu0 %v1692, 108
      %v1716 = vpop.permute.xlu0 %1715
      %v1717 = vrot.slane %v1702, 4
      %v1718 = vrot.slane %v1704, 4
      %v1719 = vrot.slane %v1706, 4
      %v1720 = vrot.slane %v1708, 4
      %v1721 = vrot.slane %v1710, 4
      %v1722 = vrot.slane %v1712, 4
      %v1723 = vrot.slane %v1714, 4
      %v1724 = vrot.slane %v1716, 4
      %v1725 = vsel %vm490, %v1717, %v1718
      %v1726 = vsel %vm680, %v1702, %v1725
      %v1727 = vsel %vm680, %v1704, %v1718
      %v1728 = vsel %vm490, %v1719, %v1720
      %v1729 = vsel %vm680, %v1706, %v1728
      %v1730 = vsel %vm680, %v1708, %v1720
      %v1731 = vsel %vm490, %v1721, %v1722
      %v1732 = vsel %vm680, %v1710, %v1731
      %v1733 = vsel %vm680, %v1712, %v1722
      %v1734 = vsel %vm490, %v1723, %v1724
      %v1735 = vsel %vm680, %v1714, %v1734
      %v1736 = vsel %vm680, %v1716, %v1724
      %1745 = vst [vmem:[#allocation5 + $0xf0] sm:$0xff] %v1726
      %1746 = vst [vmem:[#allocation5 + $0xf8] sm:$0xf] %v1727
      %1747 = vst [vmem:[#allocation5 + $0xfc] sm:$0xff] %v1729
      %1748 = vst [vmem:[#allocation5 + $0x104] sm:$0xf] %v1730
      %1749 = vst [vmem:[#allocation5 + $0x108] sm:$0xff] %v1732
      %1750 = vst [vmem:[#allocation5 + $0x110] sm:$0xf] %v1733
      %1751 = vst [vmem:[#allocation5 + $0x114] sm:$0xff] %v1735
      %1752 = vst [vmem:[#allocation5 + $0x11c] sm:$0xf] %v1736
      %v1753 = vld [vmem:[#allocation4] sm:$0xff]
      %v1754 = vld [vmem:[#allocation4 + $0x8] sm:$0xff]
      %v1755 = vld [vmem:[#allocation4 + $0x10] sm:$0xff]
      %v1756 = vld [vmem:[#allocation4 + $0x18] sm:$0xff]
      %v1757 = vld [vmem:[#allocation4 + $0x20] sm:$0xff]
      %v1758 = vld [vmem:[#allocation4 + $0x28] sm:$0xff]
      %v1759 = vld [vmem:[#allocation4 + $0x30] sm:$0xff]
      %v1760 = vld [vmem:[#allocation4 + $0x38] sm:$0xff]
      %1769 = vrot.lane.b32.xlu0 %v1753, 92
      %v1770 = vpop.permute.xlu0 %1769
      %1771 = vrot.lane.b32.xlu0 %v1754, 92
      %v1772 = vpop.permute.xlu0 %1771
      %1773 = vrot.lane.b32.xlu0 %v1755, 92
      %v1774 = vpop.permute.xlu0 %1773
      %1775 = vrot.lane.b32.xlu0 %v1756, 92
      %v1776 = vpop.permute.xlu0 %1775
      %1777 = vrot.lane.b32.xlu0 %v1757, 92
      %v1778 = vpop.permute.xlu0 %1777
      %1779 = vrot.lane.b32.xlu0 %v1758, 92
      %v1780 = vpop.permute.xlu0 %1779
      %1781 = vrot.lane.b32.xlu0 %v1759, 92
      %v1782 = vpop.permute.xlu0 %1781
      %1783 = vrot.lane.b32.xlu0 %v1760, 92
      %v1784 = vpop.permute.xlu0 %1783
      %v1785 = vrot.slane %v1770, 4
      %v1786 = vrot.slane %v1772, 4
      %v1787 = vrot.slane %v1774, 4
      %v1788 = vrot.slane %v1776, 4
      %v1789 = vrot.slane %v1778, 4
      %v1790 = vrot.slane %v1780, 4
      %v1791 = vrot.slane %v1782, 4
      %v1792 = vrot.slane %v1784, 4
      %v1793 = vsel %vm490, %v1785, %v1786
      %v1794 = vsel %vm727, %v1770, %v1793
      %v1795 = vsel %vm727, %v1772, %v1786
      %v1796 = vsel %vm490, %v1787, %v1788
      %v1797 = vsel %vm727, %v1774, %v1796
      %v1798 = vsel %vm727, %v1776, %v1788
      %v1799 = vsel %vm490, %v1789, %v1790
      %v1800 = vsel %vm727, %v1778, %v1799
      %v1801 = vsel %vm727, %v1780, %v1790
      %v1802 = vsel %vm490, %v1791, %v1792
      %v1803 = vsel %vm727, %v1782, %v1802
      %v1804 = vsel %vm727, %v1784, %v1792
      %1813 = vst [vmem:[#allocation5 + $0x120] sm:$0xff] %v1794
      %1814 = vst [vmem:[#allocation5 + $0x128] sm:$0xf] %v1795
      %1815 = vst [vmem:[#allocation5 + $0x12c] sm:$0xff] %v1797
      %1816 = vst [vmem:[#allocation5 + $0x134] sm:$0xf] %v1798
      %1817 = vst [vmem:[#allocation5 + $0x138] sm:$0xff] %v1800
      %1818 = vst [vmem:[#allocation5 + $0x140] sm:$0xf] %v1801
      %1819 = vst [vmem:[#allocation5 + $0x144] sm:$0xff] %v1803
      %1820 = vst [vmem:[#allocation5 + $0x14c] sm:$0xf] %v1804
      %v1821 = vld [vmem:[#allocation4] sm:$0xff]
      %v1822 = vld [vmem:[#allocation4 + $0x8] sm:$0xff]
      %v1823 = vld [vmem:[#allocation4 + $0x10] sm:$0xff]
      %v1824 = vld [vmem:[#allocation4 + $0x18] sm:$0xff]
      %v1825 = vld [vmem:[#allocation4 + $0x20] sm:$0xff]
      %v1826 = vld [vmem:[#allocation4 + $0x28] sm:$0xff]
      %v1827 = vld [vmem:[#allocation4 + $0x30] sm:$0xff]
      %v1828 = vld [vmem:[#allocation4 + $0x38] sm:$0xff]
      %1837 = vrot.lane.b32.xlu0 %v1821, 91
      %v1838 = vpop.permute.xlu0 %1837
      %1839 = vrot.lane.b32.xlu0 %v1822, 91
      %v1840 = vpop.permute.xlu0 %1839
      %1841 = vrot.lane.b32.xlu0 %v1823, 91
      %v1842 = vpop.permute.xlu0 %1841
      %1843 = vrot.lane.b32.xlu0 %v1824, 91
      %v1844 = vpop.permute.xlu0 %1843
      %1845 = vrot.lane.b32.xlu0 %v1825, 91
      %v1846 = vpop.permute.xlu0 %1845
      %1847 = vrot.lane.b32.xlu0 %v1826, 91
      %v1848 = vpop.permute.xlu0 %1847
      %1849 = vrot.lane.b32.xlu0 %v1827, 91
      %v1850 = vpop.permute.xlu0 %1849
      %1851 = vrot.lane.b32.xlu0 %v1828, 91
      %v1852 = vpop.permute.xlu0 %1851
      %v1853 = vrot.slane %v1838, 4
      %v1854 = vrot.slane %v1840, 4
      %v1855 = vrot.slane %v1842, 4
      %v1856 = vrot.slane %v1844, 4
      %v1857 = vrot.slane %v1846, 4
      %v1858 = vrot.slane %v1848, 4
      %v1859 = vrot.slane %v1850, 4
      %v1860 = vrot.slane %v1852, 4
      %v1861 = vsel %vm490, %v1853, %v1854
      %v1862 = vsel %vm774, %v1838, %v1861
      %v1863 = vsel %vm774, %v1840, %v1854
      %v1864 = vsel %vm490, %v1855, %v1856
      %v1865 = vsel %vm774, %v1842, %v1864
      %v1866 = vsel %vm774, %v1844, %v1856
      %v1867 = vsel %vm490, %v1857, %v1858
      %v1868 = vsel %vm774, %v1846, %v1867
      %v1869 = vsel %vm774, %v1848, %v1858
      %v1870 = vsel %vm490, %v1859, %v1860
      %v1871 = vsel %vm774, %v1850, %v1870
      %v1872 = vsel %vm774, %v1852, %v1860
      %1881 = vst [vmem:[#allocation5 + $0x150] sm:$0xff] %v1862
      %1882 = vst [vmem:[#allocation5 + $0x158] sm:$0xf] %v1863
      %1883 = vst [vmem:[#allocation5 + $0x15c] sm:$0xff] %v1865
      %1884 = vst [vmem:[#allocation5 + $0x164] sm:$0xf] %v1866
      %1885 = vst [vmem:[#allocation5 + $0x168] sm:$0xff] %v1868
      %1886 = vst [vmem:[#allocation5 + $0x170] sm:$0xf] %v1869
      %1887 = vst [vmem:[#allocation5 + $0x174] sm:$0xff] %v1871
      %1888 = vst [vmem:[#allocation5 + $0x17c] sm:$0xf] %v1872
      %v1889 = vld [vmem:[#allocation4] sm:$0xff]
      %v1890 = vld [vmem:[#allocation4 + $0x8] sm:$0xff]
      %v1891 = vld [vmem:[#allocation4 + $0x10] sm:$0xff]
      %v1892 = vld [vmem:[#allocation4 + $0x18] sm:$0xff]
      %v1893 = vld [vmem:[#allocation4 + $0x20] sm:$0xff]
      %v1894 = vld [vmem:[#allocation4 + $0x28] sm:$0xff]
      %v1895 = vld [vmem:[#allocation4 + $0x30] sm:$0xff]
      %v1896 = vld [vmem:[#allocation4 + $0x38] sm:$0xff]
      %1905 = vrot.lane.b32.xlu0 %v1889, 90
      %v1906 = vpop.permute.xlu0 %1905
      %1907 = vrot.lane.b32.xlu0 %v1890, 90
      %v1908 = vpop.permute.xlu0 %1907
      %1909 = vrot.lane.b32.xlu0 %v1891, 90
      %v1910 = vpop.permute.xlu0 %1909
      %1911 = vrot.lane.b32.xlu0 %v1892, 90
      %v1912 = vpop.permute.xlu0 %1911
      %1913 = vrot.lane.b32.xlu0 %v1893, 90
      %v1914 = vpop.permute.xlu0 %1913
      %1915 = vrot.lane.b32.xlu0 %v1894, 90
      %v1916 = vpop.permute.xlu0 %1915
      %1917 = vrot.lane.b32.xlu0 %v1895, 90
      %v1918 = vpop.permute.xlu0 %1917
      %1919 = vrot.lane.b32.xlu0 %v1896, 90
      %v1920 = vpop.permute.xlu0 %1919
      %v1921 = vrot.slane %v1906, 4
      %v1922 = vrot.slane %v1908, 4
      %v1923 = vrot.slane %v1910, 4
      %v1924 = vrot.slane %v1912, 4
      %v1925 = vrot.slane %v1914, 4
      %v1926 = vrot.slane %v1916, 4
      %v1927 = vrot.slane %v1918, 4
      %v1928 = vrot.slane %v1920, 4
      %v1929 = vsel %vm490, %v1921, %v1922
      %v1930 = vsel %vm821, %v1906, %v1929
      %v1931 = vsel %vm821, %v1908, %v1922
      %v1932 = vsel %vm490, %v1923, %v1924
      %v1933 = vsel %vm821, %v1910, %v1932
      %v1934 = vsel %vm821, %v1912, %v1924
      %v1935 = vsel %vm490, %v1925, %v1926
      %v1936 = vsel %vm821, %v1914, %v1935
      %v1937 = vsel %vm821, %v1916, %v1926
      %v1938 = vsel %vm490, %v1927, %v1928
      %v1939 = vsel %vm821, %v1918, %v1938
      %v1940 = vsel %vm821, %v1920, %v1928
      %1949 = vst [vmem:[#allocation5 + $0x180] sm:$0xff] %v1930
      %1950 = vst [vmem:[#allocation5 + $0x188] sm:$0xf] %v1931
      %1951 = vst [vmem:[#allocation5 + $0x18c] sm:$0xff] %v1933
      %1952 = vst [vmem:[#allocation5 + $0x194] sm:$0xf] %v1934
      %1953 = vst [vmem:[#allocation5 + $0x198] sm:$0xff] %v1936
      %1954 = vst [vmem:[#allocation5 + $0x1a0] sm:$0xf] %v1937
      %1955 = vst [vmem:[#allocation5 + $0x1a4] sm:$0xff] %v1939
      %1956 = vst [vmem:[#allocation5 + $0x1ac] sm:$0xf] %v1940
      %v1957 = vld [vmem:[%s2] sm:$0xff]
      %v1958 = vld [vmem:[%s2 + $0x8] sm:$0xf]
      %v1959 = vld [vmem:[%s2 + $0xc] sm:$0xff]
      %v1960 = vld [vmem:[%s2 + $0x14] sm:$0xf]
      %v1961 = vld [vmem:[%s2 + $0x18] sm:$0xff]
      %v1962 = vld [vmem:[%s2 + $0x20] sm:$0xf]
      %v1963 = vld [vmem:[%s2 + $0x24] sm:$0xff]
      %v1964 = vld [vmem:[%s2 + $0x2c] sm:$0xf]
      %v1965 = vld [vmem:[#allocation5] sm:$0xff]
      %v1966 = vld [vmem:[#allocation5 + $0x8] sm:$0xf]
      %v1967 = vld [vmem:[#allocation5 + $0xc] sm:$0xff]
      %v1968 = vld [vmem:[#allocation5 + $0x14] sm:$0xf]
      %v1969 = vld [vmem:[#allocation5 + $0x18] sm:$0xff]
      %v1970 = vld [vmem:[#allocation5 + $0x20] sm:$0xf]
      %v1971 = vld [vmem:[#allocation5 + $0x24] sm:$0xff]
      %v1972 = vld [vmem:[#allocation5 + $0x2c] sm:$0xf]
      %v1973 = vld [vmem:[#allocation5 + $0x30] sm:$0xff]
      %v1974 = vld [vmem:[#allocation5 + $0x38] sm:$0xf]
      %v1975 = vld [vmem:[#allocation5 + $0x3c] sm:$0xff]
      %v1976 = vld [vmem:[#allocation5 + $0x44] sm:$0xf]
      %v1977 = vld [vmem:[#allocation5 + $0x48] sm:$0xff]
      %v1978 = vld [vmem:[#allocation5 + $0x50] sm:$0xf]
      %v1979 = vld [vmem:[#allocation5 + $0x54] sm:$0xff]
      %v1980 = vld [vmem:[#allocation5 + $0x5c] sm:$0xf]
      %v1981 = vld [vmem:[#allocation5 + $0x60] sm:$0xff]
      %v1982 = vld [vmem:[#allocation5 + $0x68] sm:$0xf]
      %v1983 = vld [vmem:[#allocation5 + $0x6c] sm:$0xff]
      %v1984 = vld [vmem:[#allocation5 + $0x74] sm:$0xf]
      %v1985 = vld [vmem:[#allocation5 + $0x78] sm:$0xff]
      %v1986 = vld [vmem:[#allocation5 + $0x80] sm:$0xf]
      %v1987 = vld [vmem:[#allocation5 + $0x84] sm:$0xff]
      %v1988 = vld [vmem:[#allocation5 + $0x8c] sm:$0xf]
      %v1989 = vld [vmem:[#allocation5 + $0x90] sm:$0xff]
      %v1990 = vld [vmem:[#allocation5 + $0x98] sm:$0xf]
      %v1991 = vld [vmem:[#allocation5 + $0x9c] sm:$0xff]
      %v1992 = vld [vmem:[#allocation5 + $0xa4] sm:$0xf]
      %v1993 = vld [vmem:[#allocation5 + $0xa8] sm:$0xff]
      %v1994 = vld [vmem:[#allocation5 + $0xb0] sm:$0xf]
      %v1995 = vld [vmem:[#allocation5 + $0xb4] sm:$0xff]
      %v1996 = vld [vmem:[#allocation5 + $0xbc] sm:$0xf]
      %v1997 = vld [vmem:[#allocation5 + $0xc0] sm:$0xff]
      %v1998 = vld [vmem:[#allocation5 + $0xc8] sm:$0xf]
      %v1999 = vld [vmem:[#allocation5 + $0xcc] sm:$0xff]
      %v2000 = vld [vmem:[#allocation5 + $0xd4] sm:$0xf]
      %v2001 = vld [vmem:[#allocation5 + $0xd8] sm:$0xff]
      %v2002 = vld [vmem:[#allocation5 + $0xe0] sm:$0xf]
      %v2003 = vld [vmem:[#allocation5 + $0xe4] sm:$0xff]
      %v2004 = vld [vmem:[#allocation5 + $0xec] sm:$0xf]
      %v2005 = vld [vmem:[#allocation5 + $0xf0] sm:$0xff]
      %v2006 = vld [vmem:[#allocation5 + $0xf8] sm:$0xf]
      %v2007 = vld [vmem:[#allocation5 + $0xfc] sm:$0xff]
      %v2008 = vld [vmem:[#allocation5 + $0x104] sm:$0xf]
      %v2009 = vld [vmem:[#allocation5 + $0x108] sm:$0xff]
      %v2010 = vld [vmem:[#allocation5 + $0x110] sm:$0xf]
      %v2011 = vld [vmem:[#allocation5 + $0x114] sm:$0xff]
      %v2012 = vld [vmem:[#allocation5 + $0x11c] sm:$0xf]
      %v2013 = vld [vmem:[#allocation5 + $0x120] sm:$0xff]
      %v2014 = vld [vmem:[#allocation5 + $0x128] sm:$0xf]
      %v2015 = vld [vmem:[#allocation5 + $0x12c] sm:$0xff]
      %v2016 = vld [vmem:[#allocation5 + $0x134] sm:$0xf]
      %v2017 = vld [vmem:[#allocation5 + $0x138] sm:$0xff]
      %v2018 = vld [vmem:[#allocation5 + $0x140] sm:$0xf]
      %v2019 = vld [vmem:[#allocation5 + $0x144] sm:$0xff]
      %v2020 = vld [vmem:[#allocation5 + $0x14c] sm:$0xf]
      %v2021 = vld [vmem:[#allocation5 + $0x150] sm:$0xff]
      %v2022 = vld [vmem:[#allocation5 + $0x158] sm:$0xf]
      %v2023 = vld [vmem:[#allocation5 + $0x15c] sm:$0xff]
      %v2024 = vld [vmem:[#allocation5 + $0x164] sm:$0xf]
      %v2025 = vld [vmem:[#allocation5 + $0x168] sm:$0xff]
      %v2026 = vld [vmem:[#allocation5 + $0x170] sm:$0xf]
      %v2027 = vld [vmem:[#allocation5 + $0x174] sm:$0xff]
      %v2028 = vld [vmem:[#allocation5 + $0x17c] sm:$0xf]
      %v2029 = vld [vmem:[#allocation5 + $0x180] sm:$0xff]
      %v2030 = vld [vmem:[#allocation5 + $0x188] sm:$0xf]
      %v2031 = vld [vmem:[#allocation5 + $0x18c] sm:$0xff]
      %v2032 = vld [vmem:[#allocation5 + $0x194] sm:$0xf]
      %v2033 = vld [vmem:[#allocation5 + $0x198] sm:$0xff]
      %v2034 = vld [vmem:[#allocation5 + $0x1a0] sm:$0xf]
      %v2035 = vld [vmem:[#allocation5 + $0x1a4] sm:$0xff]
      %v2036 = vld [vmem:[#allocation5 + $0x1ac] sm:$0xf]
      %v2045 = vunpack.c.l.b16 %v1957
      %v2046 = vunpack.c.h.b16 %v1957
      %v2047 = vunpack.c.l.b16 %v1958
      %v2048 = vunpack.c.l.b16 %v1959
      %v2049 = vunpack.c.h.b16 %v1959
      %v2050 = vunpack.c.l.b16 %v1960
      %v2051 = vunpack.c.l.b16 %v1961
      %v2052 = vunpack.c.h.b16 %v1961
      %v2053 = vunpack.c.l.b16 %v1962
      %v2054 = vunpack.c.l.b16 %v1963
      %v2055 = vunpack.c.h.b16 %v1963
      %v2056 = vunpack.c.l.b16 %v1964
      %v2057 = vpack.c.b16 %v2048, %v2045
      %v2058 = vpack.c.b16 %v2049, %v2046
      %v2059 = vpack.c.b16 %v2050, %v2047
      %v2060 = vpack.c.b16 %v2054, %v2051
      %v2061 = vpack.c.b16 %v2055, %v2052
      %v2062 = vpack.c.b16 %v2056, %v2053
      %v2139 = vunpack.c.l.b16 %v1965
      %v2140 = vunpack.c.h.b16 %v1965
      %v2141 = vunpack.c.l.b16 %v1966
      %v2142 = vunpack.c.l.b16 %v1967
      %v2143 = vunpack.c.h.b16 %v1967
      %v2144 = vunpack.c.l.b16 %v1968
      %v2145 = vunpack.c.l.b16 %v1969
      %v2146 = vunpack.c.h.b16 %v1969
      %v2147 = vunpack.c.l.b16 %v1970
      %v2148 = vunpack.c.l.b16 %v1971
      %v2149 = vunpack.c.h.b16 %v1971
      %v2150 = vunpack.c.l.b16 %v1972
      %v2151 = vunpack.c.l.b16 %v1973
      %v2152 = vunpack.c.h.b16 %v1973
      %v2153 = vunpack.c.l.b16 %v1974
      %v2154 = vunpack.c.l.b16 %v1975
      %v2155 = vunpack.c.h.b16 %v1975
      %v2156 = vunpack.c.l.b16 %v1976
      %v2157 = vunpack.c.l.b16 %v1977
      %v2158 = vunpack.c.h.b16 %v1977
      %v2159 = vunpack.c.l.b16 %v1978
      %v2160 = vunpack.c.l.b16 %v1979
      %v2161 = vunpack.c.h.b16 %v1979
      %v2162 = vunpack.c.l.b16 %v1980
      %v2163 = vunpack.c.l.b16 %v1981
      %v2164 = vunpack.c.h.b16 %v1981
      %v2165 = vunpack.c.l.b16 %v1982
      %v2166 = vunpack.c.l.b16 %v1983
      %v2167 = vunpack.c.h.b16 %v1983
      %v2168 = vunpack.c.l.b16 %v1984
      %v2169 = vunpack.c.l.b16 %v1985
      %v2170 = vunpack.c.h.b16 %v1985
      %v2171 = vunpack.c.l.b16 %v1986
      %v2172 = vunpack.c.l.b16 %v1987
      %v2173 = vunpack.c.h.b16 %v1987
      %v2174 = vunpack.c.l.b16 %v1988
      %v2175 = vunpack.c.l.b16 %v1989
      %v2176 = vunpack.c.h.b16 %v1989
      %v2177 = vunpack.c.l.b16 %v1990
      %v2178 = vunpack.c.l.b16 %v1991
      %v2179 = vunpack.c.h.b16 %v1991
      %v2180 = vunpack.c.l.b16 %v1992
      %v2181 = vunpack.c.l.b16 %v1993
      %v2182 = vunpack.c.h.b16 %v1993
      %v2183 = vunpack.c.l.b16 %v1994
      %v2184 = vunpack.c.l.b16 %v1995
      %v2185 = vunpack.c.h.b16 %v1995
      %v2186 = vunpack.c.l.b16 %v1996
      %v2187 = vunpack.c.l.b16 %v1997
      %v2188 = vunpack.c.h.b16 %v1997
      %v2189 = vunpack.c.l.b16 %v1998
      %v2190 = vunpack.c.l.b16 %v1999
      %v2191 = vunpack.c.h.b16 %v1999
      %v2192 = vunpack.c.l.b16 %v2000
      %v2193 = vunpack.c.l.b16 %v2001
      %v2194 = vunpack.c.h.b16 %v2001
      %v2195 = vunpack.c.l.b16 %v2002
      %v2196 = vunpack.c.l.b16 %v2003
      %v2197 = vunpack.c.h.b16 %v2003
      %v2198 = vunpack.c.l.b16 %v2004
      %v2199 = vunpack.c.l.b16 %v2005
      %v2200 = vunpack.c.h.b16 %v2005
      %v2201 = vunpack.c.l.b16 %v2006
      %v2202 = vunpack.c.l.b16 %v2007
      %v2203 = vunpack.c.h.b16 %v2007
      %v2204 = vunpack.c.l.b16 %v2008
      %v2205 = vunpack.c.l.b16 %v2009
      %v2206 = vunpack.c.h.b16 %v2009
      %v2207 = vunpack.c.l.b16 %v2010
      %v2208 = vunpack.c.l.b16 %v2011
      %v2209 = vunpack.c.h.b16 %v2011
      %v2210 = vunpack.c.l.b16 %v2012
      %v2211 = vunpack.c.l.b16 %v2013
      %v2212 = vunpack.c.h.b16 %v2013
      %v2213 = vunpack.c.l.b16 %v2014
      %v2214 = vunpack.c.l.b16 %v2015
      %v2215 = vunpack.c.h.b16 %v2015
      %v2216 = vunpack.c.l.b16 %v2016
      %v2217 = vunpack.c.l.b16 %v2017
      %v2218 = vunpack.c.h.b16 %v2017
      %v2219 = vunpack.c.l.b16 %v2018
      %v2220 = vunpack.c.l.b16 %v2019
      %v2221 = vunpack.c.h.b16 %v2019
      %v2222 = vunpack.c.l.b16 %v2020
      %v2223 = vunpack.c.l.b16 %v2021
      %v2224 = vunpack.c.h.b16 %v2021
      %v2225 = vunpack.c.l.b16 %v2022
      %v2226 = vunpack.c.l.b16 %v2023
      %v2227 = vunpack.c.h.b16 %v2023
      %v2228 = vunpack.c.l.b16 %v2024
      %v2229 = vunpack.c.l.b16 %v2025
      %v2230 = vunpack.c.h.b16 %v2025
      %v2231 = vunpack.c.l.b16 %v2026
      %v2232 = vunpack.c.l.b16 %v2027
      %v2233 = vunpack.c.h.b16 %v2027
      %v2234 = vunpack.c.l.b16 %v2028
      %v2235 = vunpack.c.l.b16 %v2029
      %v2236 = vunpack.c.h.b16 %v2029
      %v2237 = vunpack.c.l.b16 %v2030
      %v2238 = vunpack.c.l.b16 %v2031
      %v2239 = vunpack.c.h.b16 %v2031
      %v2240 = vunpack.c.l.b16 %v2032
      %v2241 = vunpack.c.l.b16 %v2033
      %v2242 = vunpack.c.h.b16 %v2033
      %v2243 = vunpack.c.l.b16 %v2034
      %v2244 = vunpack.c.l.b16 %v2035
      %v2245 = vunpack.c.h.b16 %v2035
      %v2246 = vunpack.c.l.b16 %v2036
      %v2247 = vpack.c.b16 %v2142, %v2139
      %v2248 = vpack.c.b16 %v2143, %v2140
      %v2249 = vpack.c.b16 %v2144, %v2141
      %v2250 = vpack.c.b16 %v2148, %v2145
      %v2251 = vpack.c.b16 %v2149, %v2146
      %v2252 = vpack.c.b16 %v2150, %v2147
      %v2253 = vpack.c.b16 %v2154, %v2151
      %v2254 = vpack.c.b16 %v2155, %v2152
      %v2255 = vpack.c.b16 %v2156, %v2153
      %v2256 = vpack.c.b16 %v2160, %v2157
      %v2257 = vpack.c.b16 %v2161, %v2158
      %v2258 = vpack.c.b16 %v2162, %v2159
      %v2259 = vpack.c.b16 %v2166, %v2163
      %v2260 = vpack.c.b16 %v2167, %v2164
      %v2261 = vpack.c.b16 %v2168, %v2165
      %v2262 = vpack.c.b16 %v2172, %v2169
      %v2263 = vpack.c.b16 %v2173, %v2170
      %v2264 = vpack.c.b16 %v2174, %v2171
      %v2265 = vpack.c.b16 %v2178, %v2175
      %v2266 = vpack.c.b16 %v2179, %v2176
      %v2267 = vpack.c.b16 %v2180, %v2177
      %v2268 = vpack.c.b16 %v2184, %v2181
      %v2269 = vpack.c.b16 %v2185, %v2182
      %v2270 = vpack.c.b16 %v2186, %v2183
      %v2271 = vpack.c.b16 %v2190, %v2187
      %v2272 = vpack.c.b16 %v2191, %v2188
      %v2273 = vpack.c.b16 %v2192, %v2189
      %v2274 = vpack.c.b16 %v2196, %v2193
      %v2275 = vpack.c.b16 %v2197, %v2194
      %v2276 = vpack.c.b16 %v2198, %v2195
      %v2277 = vpack.c.b16 %v2202, %v2199
      %v2278 = vpack.c.b16 %v2203, %v2200
      %v2279 = vpack.c.b16 %v2204, %v2201
      %v2280 = vpack.c.b16 %v2208, %v2205
      %v2281 = vpack.c.b16 %v2209, %v2206
      %v2282 = vpack.c.b16 %v2210, %v2207
      %v2283 = vpack.c.b16 %v2214, %v2211
      %v2284 = vpack.c.b16 %v2215, %v2212
      %v2285 = vpack.c.b16 %v2216, %v2213
      %v2286 = vpack.c.b16 %v2220, %v2217
      %v2287 = vpack.c.b16 %v2221, %v2218
      %v2288 = vpack.c.b16 %v2222, %v2219
      %v2289 = vpack.c.b16 %v2226, %v2223
      %v2290 = vpack.c.b16 %v2227, %v2224
      %v2291 = vpack.c.b16 %v2228, %v2225
      %v2292 = vpack.c.b16 %v2232, %v2229
      %v2293 = vpack.c.b16 %v2233, %v2230
      %v2294 = vpack.c.b16 %v2234, %v2231
      %v2295 = vpack.c.b16 %v2238, %v2235
      %v2296 = vpack.c.b16 %v2239, %v2236
      %v2297 = vpack.c.b16 %v2240, %v2237
      %v2298 = vpack.c.b16 %v2244, %v2241
      %v2299 = vpack.c.b16 %v2245, %v2242
      %v2300 = vpack.c.b16 %v2246, %v2243
      %vm2355 = vcmask 261120
      %v2357 = vsel %vm2355, %v2059, 0
      %v2360 = vsel %vm2355, %v2062, 0
      %2362 = vmatprep.subr.bf16.mxu0 %v2269
      %2363 = vmatpush1.bf16.msra.mxu0 %v2268
      %2364 = vmatprep.subr.bf16.mxu0 %v2266
      %2365 = vmatpush1.bf16.msra.mxu0 %v2265
      %2366 = vmatprep.subr.bf16.mxu0 %v2263
      %2367 = vmatpush1.bf16.msra.mxu0 %v2262
      %2368 = vmatprep.subr.bf16.mxu0 %v2260
      %2369 = vmatpush1.bf16.msra.mxu0 %v2259
      %2370 = vmatprep.subr.bf16.mxu0 %v2257
      %2371 = vmatpush1.bf16.msra.mxu0 %v2256
      %2372 = vmatprep.subr.bf16.mxu0 %v2254
      %2373 = vmatpush1.bf16.msra.mxu0 %v2253
      %2374 = vmatprep.subr.bf16.mxu0 %v2251
      %2375 = vmatpush1.bf16.msra.mxu0 %v2250
      %2376 = vmatprep.subr.bf16.mxu0 %v2248
      %2377 = vmatpush1.bf16.msra.mxu0 %v2247
      %2378 = vmatprep.subr.bf16.mxu0 %v2293
      %2379 = vmatpush2.bf16.msra.mxu0 %v2292
      %2380 = vmatprep.subr.bf16.mxu0 %v2290
      %2381 = vmatpush2.bf16.msra.mxu0 %v2289
      %2382 = vmatprep.subr.bf16.mxu0 %v2287
      %2383 = vmatpush2.bf16.msra.mxu0 %v2286
      %2384 = vmatprep.subr.bf16.mxu0 %v2284
      %2385 = vmatpush2.bf16.msra.mxu0 %v2283
      %2386 = vmatprep.subr.bf16.mxu0 %v2281
      %2387 = vmatpush2.bf16.msra.mxu0 %v2280
      %2388 = vmatprep.subr.bf16.mxu0 %v2278
      %2389 = vmatpush2.bf16.msra.mxu0 %v2277
      %2390 = vmatprep.subr.bf16.mxu0 %v2275
      %2391 = vmatpush2.bf16.msra.mxu0 %v2274
      %2392 = vmatprep.subr.bf16.mxu0 %v2272
      %2393 = vmatpush2.bf16.msra.mxu0 %v2271
      %2394 = vmatprep.mubr.bf16.mxu0 %v2058
      %2395 = vmatmul.mubr.bf16.gmra.mxu0 %v2057
      %v2396 = vpop.f32.mrf.mxu0
      %v2397 = vadd.f32 0.0, %v2396
      %v2398 = vpop.f32.mrf.mxu0
      %v2399 = vadd.f32 0.0, %v2398
      %v2400 = vpop.f32.mrf.mxu0
      %v2401 = vadd.f32 0.0, %v2400
      %v2402 = vpop.f32.mrf.mxu0
      %v2403 = vadd.f32 0.0, %v2402
      %2404 = vmatprep.mubr.bf16.mxu0 %v2061
      %2405 = vmatmul.mubr.bf16.gmra.mxu0 %v2060
      %v2406 = vpop.f32.mrf.mxu0
      %v2407 = vadd.f32 0.0, %v2406
      %v2408 = vpop.f32.mrf.mxu0
      %v2409 = vadd.f32 0.0, %v2408
      %v2410 = vpop.f32.mrf.mxu0
      %v2411 = vadd.f32 0.0, %v2410
      %v2412 = vpop.f32.mrf.mxu0
      %v2413 = vadd.f32 0.0, %v2412
      %2414 = vdwg.mxu0
      %2415 = vmatprep.subr.bf16.mxu0 0
      %2416 = vmatpush1.bf16.msra.mxu0 0
      %2417 = vmatprep.subr.bf16.mxu0 0
      %2418 = vmatpush1.bf16.msra.mxu0 0
      %2419 = vmatprep.subr.bf16.mxu0 0
      %2420 = vmatpush1.bf16.msra.mxu0 0
      %2421 = vmatprep.subr.bf16.mxu0 0
      %2422 = vmatpush1.bf16.msra.mxu0 0
      %2423 = vmatprep.subr.bf16.mxu0 0
      %2424 = vmatpush1.bf16.msra.mxu0 0
      %2425 = vmatprep.subr.bf16.mxu0 0
      %2426 = vmatpush1.bf16.msra.mxu0 0
      %2427 = vmatprep.subr.bf16.mxu0 %v2299
      %2428 = vmatpush1.bf16.msra.mxu0 %v2298
      %2429 = vmatprep.subr.bf16.mxu0 %v2296
      %2430 = vmatpush1.bf16.msra.mxu0 %v2295
      %2431 = vmatprep.subr.bf16.mxu0 0
      %2432 = vmatpush2.bf16.msra.mxu0 0
      %2433 = vmatprep.subr.bf16.mxu0 0
      %2434 = vmatpush2.bf16.msra.mxu0 0
      %2435 = vmatprep.subr.bf16.mxu0 0
      %2436 = vmatpush2.bf16.msra.mxu0 0
      %2437 = vmatprep.subr.bf16.mxu0 0
      %2438 = vmatpush2.bf16.msra.mxu0 0
      %2439 = vmatprep.subr.bf16.mxu0 0
      %2440 = vmatpush2.bf16.msra.mxu0 0
      %2441 = vmatprep.subr.bf16.mxu0 0
      %2442 = vmatpush2.bf16.msra.mxu0 0
      %2443 = vmatprep.subr.bf16.mxu0 0
      %2444 = vmatpush2.bf16.msra.mxu0 0
      %2445 = vmatprep.subr.bf16.mxu0 0
      %2446 = vmatpush2.bf16.msra.mxu0 0
      %2447 = vmatprep.mubr.bf16.mxu0 0
      %2448 = vmatmul.mubr.bf16.gmra.mxu0 %v2357
      %v2449 = vpop.f32.mrf.mxu0
      %v2450 = vadd.f32 %v2397, %v2449
      %v2451 = vpop.f32.mrf.mxu0
      %v2452 = vadd.f32 %v2399, %v2451
      %v2453 = vpop.f32.mrf.mxu0
      %v2454 = vadd.f32 %v2401, %v2453
      %v2455 = vpop.f32.mrf.mxu0
      %v2456 = vadd.f32 %v2403, %v2455
      %2457 = vmatprep.mubr.bf16.mxu0 0
      %2458 = vmatmul.mubr.bf16.gmra.mxu0 %v2360
      %v2459 = vpop.f32.mrf.mxu0
      %v2460 = vadd.f32 %v2407, %v2459
      %v2461 = vpop.f32.mrf.mxu0
      %v2462 = vadd.f32 %v2409, %v2461
      %v2463 = vpop.f32.mrf.mxu0
      %v2464 = vadd.f32 %v2411, %v2463
      %v2465 = vpop.f32.mrf.mxu0
      %v2466 = vadd.f32 %v2413, %v2465
      %2467 = vdwg.mxu0
      %2468 = vmatprep.subr.bf16.mxu0 0
      %2469 = vmatpush1.bf16.msra.mxu0 %v2270
      %2470 = vmatprep.subr.bf16.mxu0 0
      %2471 = vmatpush1.bf16.msra.mxu0 %v2267
      %2472 = vmatprep.subr.bf16.mxu0 0
      %2473 = vmatpush1.bf16.msra.mxu0 %v2264
      %2474 = vmatprep.subr.bf16.mxu0 0
      %2475 = vmatpush1.bf16.msra.mxu0 %v2261
      %2476 = vmatprep.subr.bf16.mxu0 0
      %2477 = vmatpush1.bf16.msra.mxu0 %v2258
      %2478 = vmatprep.subr.bf16.mxu0 0
      %2479 = vmatpush1.bf16.msra.mxu0 %v2255
      %2480 = vmatprep.subr.bf16.mxu0 0
      %2481 = vmatpush1.bf16.msra.mxu0 %v2252
      %2482 = vmatprep.subr.bf16.mxu0 0
      %2483 = vmatpush1.bf16.msra.mxu0 %v2249
      %2484 = vmatprep.subr.bf16.mxu0 0
      %2485 = vmatpush2.bf16.msra.mxu0 %v2294
      %2486 = vmatprep.subr.bf16.mxu0 0
      %2487 = vmatpush2.bf16.msra.mxu0 %v2291
      %2488 = vmatprep.subr.bf16.mxu0 0
      %2489 = vmatpush2.bf16.msra.mxu0 %v2288
      %2490 = vmatprep.subr.bf16.mxu0 0
      %2491 = vmatpush2.bf16.msra.mxu0 %v2285
      %2492 = vmatprep.subr.bf16.mxu0 0
      %2493 = vmatpush2.bf16.msra.mxu0 %v2282
      %2494 = vmatprep.subr.bf16.mxu0 0
      %2495 = vmatpush2.bf16.msra.mxu0 %v2279
      %2496 = vmatprep.subr.bf16.mxu0 0
      %2497 = vmatpush2.bf16.msra.mxu0 %v2276
      %2498 = vmatprep.subr.bf16.mxu0 0
      %2499 = vmatpush2.bf16.msra.mxu0 %v2273
      %2500 = vmatprep.mubr.bf16.mxu0 %v2058
      %2501 = vmatmul.mubr.bf16.gmra.mxu0 %v2057
      %v2502 = vpop.f32.mrf.mxu0
      %v2503 = vadd.f32 0.0, %v2502
      %v2504 = vpop.f32.mrf.mxu0
      %v2505 = vpop.f32.mrf.mxu0
      %v2506 = vadd.f32 0.0, %v2505
      %v2507 = vpop.f32.mrf.mxu0
      %2508 = vmatprep.mubr.bf16.mxu0 %v2061
      %2509 = vmatmul.mubr.bf16.gmra.mxu0 %v2060
      %v2510 = vpop.f32.mrf.mxu0
      %v2511 = vadd.f32 0.0, %v2510
      %v2512 = vpop.f32.mrf.mxu0
      %v2513 = vpop.f32.mrf.mxu0
      %v2514 = vadd.f32 0.0, %v2513
      %v2515 = vpop.f32.mrf.mxu0
      %2516 = vdwg.mxu0
      %2517 = vmatprep.subr.bf16.mxu0 0
      %2518 = vmatpush1.bf16.msra.mxu0 0
      %2519 = vmatprep.subr.bf16.mxu0 0
      %2520 = vmatpush1.bf16.msra.mxu0 0
      %2521 = vmatprep.subr.bf16.mxu0 0
      %2522 = vmatpush1.bf16.msra.mxu0 0
      %2523 = vmatprep.subr.bf16.mxu0 0
      %2524 = vmatpush1.bf16.msra.mxu0 0
      %2525 = vmatprep.subr.bf16.mxu0 0
      %2526 = vmatpush1.bf16.msra.mxu0 0
      %2527 = vmatprep.subr.bf16.mxu0 0
      %2528 = vmatpush1.bf16.msra.mxu0 0
      %2529 = vmatprep.subr.bf16.mxu0 0
      %2530 = vmatpush1.bf16.msra.mxu0 %v2300
      %2531 = vmatprep.subr.bf16.mxu0 0
      %2532 = vmatpush1.bf16.msra.mxu0 %v2297
      %2533 = vmatprep.subr.bf16.mxu0 0
      %2534 = vmatpush2.bf16.msra.mxu0 0
      %2535 = vmatprep.subr.bf16.mxu0 0
      %2536 = vmatpush2.bf16.msra.mxu0 0
      %2537 = vmatprep.subr.bf16.mxu0 0
      %2538 = vmatpush2.bf16.msra.mxu0 0
      %2539 = vmatprep.subr.bf16.mxu0 0
      %2540 = vmatpush2.bf16.msra.mxu0 0
      %2541 = vmatprep.subr.bf16.mxu0 0
      %2542 = vmatpush2.bf16.msra.mxu0 0
      %2543 = vmatprep.subr.bf16.mxu0 0
      %2544 = vmatpush2.bf16.msra.mxu0 0
      %2545 = vmatprep.subr.bf16.mxu0 0
      %2546 = vmatpush2.bf16.msra.mxu0 0
      %2547 = vmatprep.subr.bf16.mxu0 0
      %2548 = vmatpush2.bf16.msra.mxu0 0
      %2549 = vmatprep.mubr.bf16.mxu0 0
      %2550 = vmatmul.mubr.bf16.gmra.mxu0 %v2357
      %v2551 = vpop.f32.mrf.mxu0
      %v2552 = vadd.f32 %v2503, %v2551
      %v2553 = vpop.f32.mrf.mxu0
      %v2554 = vpop.f32.mrf.mxu0
      %v2555 = vadd.f32 %v2506, %v2554
      %v2556 = vpop.f32.mrf.mxu0
      %2557 = vmatprep.mubr.bf16.mxu0 0
      %2558 = vmatmul.mubr.bf16.gmra.mxu0 %v2360
      %v2559 = vpop.f32.mrf.mxu0
      %v2560 = vadd.f32 %v2511, %v2559
      %v2561 = vpop.f32.mrf.mxu0
      %v2562 = vpop.f32.mrf.mxu0
      %v2563 = vadd.f32 %v2514, %v2562
      %v2564 = vpop.f32.mrf.mxu0
      %2565 = vdwg.mxu0
      %2566 = vst [vmem:[%s305] sm:$0xff] %v2450
      %2567 = vst [vmem:[%s305 + $0x8] sm:$0xff] %v2452
      %2568 = vst [vmem:[%s305 + $0x10] sm:$0xff] %v2552
      %2569 = vst [vmem:[%s305 + $0x18] sm:$0xff] %v2454
      %2570 = vst [vmem:[%s305 + $0x20] sm:$0xff] %v2456
      %2571 = vst [vmem:[%s305 + $0x28] sm:$0xff] %v2555
      %2572 = vst [vmem:[%s305 + $0x30] sm:$0xff] %v2460
      %2573 = vst [vmem:[%s305 + $0x38] sm:$0xff] %v2462
      %2574 = vst [vmem:[%s305 + $0x40] sm:$0xff] %v2560
      %2575 = vst [vmem:[%s305 + $0x48] sm:$0xff] %v2464
      %2576 = vst [vmem:[%s305 + $0x50] sm:$0xff] %v2466
      %2577 = vst [vmem:[%s305 + $0x58] sm:$0xff] %v2563
      %p2578 = scmp.lt.s32.totalorder %s19, 1
      %s2579 = scalar_select %p2578, %s19, 1
      %s2580 = smul.addr %s2579, 12
      %s2581 = smul.addr %s2580, 8
      %s2582 = scalar_lea.vmem %s8, %s2581
      // Predicated region
      $region53: #{learn_vector_block_forward.1} parent=51 // pred_check
        %p2583 = pneg %p210
      $region54: #{learn_vector_block_forward.1} parent=51 // pred_check_branch
        %2585 = sbr.rel (%p2583) target = $region56
      $region55: #{learn_vector_block_forward.1} parent=51 // pred_region
        _
      $region56: #{learn_vector_block_forward.1} parent=51 // pred_fallthru
        _
    $region52: #{learn_vector_block_forward.1} parent=5 // pred_fallthru
      _
    %p2586 = scmp.le.s32.totalorder 2, %s14
    // Predicated region
    $region57: #{learn_vector_block_forward.1} parent=5 // pred_check
      %p2587 = pneg %p2586
    $region58: #{learn_vector_block_forward.1} parent=5 // pred_check_branch
      %2589 = sbr.rel (%p2587) target = $region60
    $region59: #{learn_vector_block_forward.1} parent=5 // pred_region
      %s2590 = ssub.s32 %s14, 2
      // Predicated region
      $region61: #{learn_vector_block_forward.1} parent=59 // pred_check
        %p2591 = pneg %p216
      $region62: #{learn_vector_block_forward.1} parent=59 // pred_check_branch
        %2593 = sbr.rel (%p2591) target = $region64
      $region63: #{learn_vector_block_forward.1} parent=59 // pred_region
        %p2594 = scmp.lt.s32.totalorder %s20, 1
        %s2595 = scalar_select %p2594, %s20, 1
        %s2596 = smul.addr %s2595, 12
        %s2597 = smul.addr %s2596, 8
        %s2598 = scalar_lea.vmem %s8, %s2597
      $region64: #{learn_vector_block_forward.1} parent=59 // pred_fallthru
        _
    $region60: #{learn_vector_block_forward.1} parent=5 // pred_fallthru
      _
  $region6: #{learn_vector_block_forward.1} parent=0 // loop_footer
    %s18 = sadd.s32 1, %s14
  $region7: #{learn_vector_block_forward.1} parent=0 // loop_footer_branch
    %13 = sbr.rel target = $region3
  $region8: #{learn_vector_block_forward.1} parent=0 // loop_exit
    _

</llo_original>
